<compile_context>
chip_gen: v7x
topology: tpu7x:2x2x1
jax: 0.10.0
libtpu: 0.0.40
codegen_flags: <defaults>
</compile_context>

<pallas_src>
import functools
import math

import jax
import jax.numpy as jnp
from jax.experimental import pallas as pl
from jax.experimental.pallas import tpu as pltpu

# Hidden-layer widths of LargePinnNet (final linear goes to num_outputs).
HIDDEN = (728, 512, 256, 256, 128, 64, 32)
LANE = 128          # TPU lane width — pad every feature dim to a multiple of this
MAX_TILE = 512      # batch rows per grid step (multiple of 8 sublanes)


def _round_up(n, m):
    return ((n + m - 1) // m) * m


# ---------------------------------------------------------------------------
# Kernel
# ---------------------------------------------------------------------------
def _mlp_kernel(x_ref, *refs):
    """refs = (w1, b1, ..., w8, b8, out_ref).

    Weights are bf16 (in_pad, out_pad); biases are f32 (1, out_pad); all dims
    are lane-padded. Matmul operands are bf16, accumulation / bias / tanh f32.
    """
    out_ref = refs[-1]
    wb = refs[:-1]
    n_layers = len(wb) // 2

    h = x_ref[...].astype(jnp.float32)
    for layer in range(n_layers):
        w = wb[2 * layer][...]                       # bf16 (in_pad, out_pad)
        b = wb[2 * layer + 1][...]                   # f32  (1, out_pad)
        h = jnp.dot(h.astype(jnp.bfloat16), w,
                    preferred_element_type=jnp.float32) + b
        if layer != n_layers - 1:                    # no activation after final linear
            h = jnp.tanh(h)
    out_ref[...] = h.astype(out_ref.dtype)


# ---------------------------------------------------------------------------
# Parameter construction / packing
# ---------------------------------------------------------------------------
def init_params(key, num_features, num_outputs):
    """Deterministic PyTorch-style init: U(-1/sqrt(fan_in), 1/sqrt(fan_in)).

    Weights are stored as (in, out) — the transpose of PyTorch's (out, in).
    """
    dims = (num_features,) + HIDDEN + (num_outputs,)
    params = []
    for i in range(len(dims) - 1):
        fan_in, fan_out = dims[i], dims[i + 1]
        key, kw, kb = jax.random.split(key, 3)
        bound = 1.0 / math.sqrt(fan_in)
        w = jax.random.uniform(kw, (fan_in, fan_out), jnp.float32, -bound, bound)
        b = jax.random.uniform(kb, (1, fan_out), jnp.float32, -bound, bound)
        params.append((w, b))
    return params


def pack_params(params):
    """Zero-pad every layer dim up to a multiple of 128 (numerically exact:
    zero weight rows/columns and zero biases propagate zeros through tanh and
    subsequent matmuls) and cast weights to bf16. Biases stay f32."""
    packed = []
    for w, b in params:
        in_p = _round_up(w.shape[0], LANE)
        out_p = _round_up(w.shape[1], LANE)
        wp = jnp.zeros((in_p, out_p), jnp.float32).at[: w.shape[0], : w.shape[1]].set(w)
        bp = jnp.zeros((1, out_p), jnp.float32).at[:, : b.shape[1]].set(b)
        packed.append((wp.astype(jnp.bfloat16), bp))
    return packed


# ---------------------------------------------------------------------------
# Wrapper
# ---------------------------------------------------------------------------
@functools.partial(jax.jit, static_argnames=("num_outputs",))
def large_pinn_net(x, flat_packed, *, num_outputs):
    """x: (batch, num_features) f32. flat_packed: [w1,b1,...,w8,b8] padded params.

    Returns (batch, num_outputs) f32.
    """
    batch, feat = x.shape
    feat_pad = flat_packed[0].shape[0]
    out_pad = flat_packed[-1].shape[-1]

    # Batch tiling: multiple of 8 sublanes, capped at MAX_TILE rows per step.
    tile = min(MAX_TILE, _round_up(batch, 8))
    padded_batch = _round_up(batch, tile)
    grid = (padded_batch // tile,)

    # Zero-pad x rows (to a whole number of tiles) and feature lanes.
    x_p = jnp.zeros((padded_batch, feat_pad), jnp.float32).at[:batch, :feat].set(x)

    # x / out move per grid step; weights & biases are resident (constant index_map).
    in_specs = [pl.BlockSpec((tile, feat_pad), lambda i: (i, 0))]
    for p in flat_packed:
        in_specs.append(pl.BlockSpec(p.shape, lambda i: (0, 0)))
    out_spec = pl.BlockSpec((tile, out_pad), lambda i: (i, 0))

    # Advisory cost estimate (padded shapes).
    flops = 0
    transcendentals = 0
    bytes_accessed = x_p.size * 4 + padded_batch * out_pad * 4
    n_layers = len(flat_packed) // 2
    for l in range(n_layers):
        w = flat_packed[2 * l]
        b = flat_packed[2 * l + 1]
        flops += 2 * padded_batch * w.shape[0] * w.shape[1]
        bytes_accessed += w.size * w.dtype.itemsize + b.size * b.dtype.itemsize
        if l != n_layers - 1:
            transcendentals += padded_batch * w.shape[1]

    out = pl.pallas_call(
        _mlp_kernel,
        out_shape=jax.ShapeDtypeStruct((padded_batch, out_pad), jnp.float32),
        grid_spec=pltpu.PrefetchScalarGridSpec(
            num_scalar_prefetch=0,
            grid=grid,
            in_specs=in_specs,
            out_specs=out_spec,
        ),
        compiler_params=pltpu.CompilerParams(
            dimension_semantics=("parallel",),
        ),
        cost_estimate=pl.CostEstimate(
            flops=flops,
            transcendentals=transcendentals,
            bytes_accessed=bytes_accessed,
        ),
    )(x_p, *flat_packed)

    return out[:batch, :num_outputs]


# ---------------------------------------------------------------------------
# References
# ---------------------------------------------------------------------------
def _reference_packed(x, packed, num_outputs):
    """Pure-JAX reference that mirrors the kernel numerics exactly
    (bf16 matmul operands, f32 accumulation / bias / tanh, zero padding)."""
    feat_pad = packed[0][0].shape[0]
    h = jnp.zeros((x.shape[0], feat_pad), jnp.float32).at[:, : x.shape[1]].set(x)
    for i, (w, b) in enumerate(packed):
        h = jnp.dot(h.astype(jnp.bfloat16), w, preferred_element_type=jnp.float32) + b
        if i != len(packed) - 1:
            h = jnp.tanh(h)
    return h[:, :num_outputs]


def _reference_f32(x, params):
    """Full-precision reference matching the PyTorch forward pass."""
    h = x
    for i, (w, b) in enumerate(params):
        h = h @ w + b
        if i != len(params) - 1:
            h = jnp.tanh(h)
    return h


# ---------------------------------------------------------------------------
if __name__ == "__main__":
    num_features = 16
    num_outputs = 4
    batch = 8

    key = jax.random.PRNGKey(0)
    key, kx = jax.random.split(key)
    x = jax.random.normal(kx, (batch, num_features), jnp.float32)

    params = init_params(key, num_features, num_outputs)
    packed = pack_params(params)
    flat_packed = [a for wb in packed for a in wb]

    # Small batch (single-tile path).
    out = large_pinn_net(x, flat_packed, num_outputs=num_outputs)
    out = jax.block_until_ready(out)
    assert out.shape == (batch, num_outputs)

    ref_bf16 = _reference_packed(x, packed, num_outputs)
    assert jnp.allclose(out, ref_bf16, atol=2e-3, rtol=2e-3), \
        "mismatch vs. bf16-matched pure-JAX reference"

    ref_f32 = _reference_f32(x, params)
    assert jnp.allclose(out, ref_f32, atol=1e-1, rtol=1e-1), \
        "mismatch vs. f32 PyTorch-semantics reference"

    # Larger batch exercising the gridded / pipelined multi-tile path (grid > 1).
    xb = jax.random.normal(jax.random.PRNGKey(1), (1024, num_features), jnp.float32)
    out_b = jax.block_until_ready(large_pinn_net(xb, flat_packed, num_outputs=num_outputs))
    ref_b = _reference_packed(xb, packed, num_outputs)
    assert out_b.shape == (1024, num_outputs)
    assert jnp.allclose(out_b, ref_b, atol=2e-3, rtol=2e-3), \
        "mismatch vs. reference on gridded batch"

    print("KERNEL_OK")
</pallas_src>

<mosaic_0001>
module attributes {stable_mosaic.version = 11 : i64} {
  func.func @_mlp_kernel(%arg0: i32, %arg1: memref<8x128xf32, #tpu.memory_space<vmem>>, %arg2: memref<128x768xbf16, #tpu.memory_space<vmem>>, %arg3: memref<1x768xf32, #tpu.memory_space<vmem>>, %arg4: memref<768x512xbf16, #tpu.memory_space<vmem>>, %arg5: memref<1x512xf32, #tpu.memory_space<vmem>>, %arg6: memref<512x256xbf16, #tpu.memory_space<vmem>>, %arg7: memref<1x256xf32, #tpu.memory_space<vmem>>, %arg8: memref<256x256xbf16, #tpu.memory_space<vmem>>, %arg9: memref<1x256xf32, #tpu.memory_space<vmem>>, %arg10: memref<256x128xbf16, #tpu.memory_space<vmem>>, %arg11: memref<1x128xf32, #tpu.memory_space<vmem>>, %arg12: memref<128x128xbf16, #tpu.memory_space<vmem>>, %arg13: memref<1x128xf32, #tpu.memory_space<vmem>>, %arg14: memref<128x128xbf16, #tpu.memory_space<vmem>>, %arg15: memref<1x128xf32, #tpu.memory_space<vmem>>, %arg16: memref<128x128xbf16, #tpu.memory_space<vmem>>, %arg17: memref<1x128xf32, #tpu.memory_space<vmem>>, %arg18: memref<8x128xf32, #tpu.memory_space<vmem>>) attributes {dimension_semantics = [#tpu.dimension_semantics<parallel>], iteration_bounds = array<i64: 1>, scalar_prefetch = 0 : i64, scratch_operands = 0 : i64, tpu.core_type = #tpu.core_type<tc>, window_params = [{transform_indices = @transform_0, window_bounds = array<i64: 8, 128>}, {pipeline_mode = #tpu.pipeline_mode<synchronous>, transform_indices = @transform_1, window_bounds = array<i64: 128, 768>}, {pipeline_mode = #tpu.pipeline_mode<synchronous>, transform_indices = @transform_2, window_bounds = array<i64: 1, 768>}, {pipeline_mode = #tpu.pipeline_mode<synchronous>, transform_indices = @transform_3, window_bounds = array<i64: 768, 512>}, {pipeline_mode = #tpu.pipeline_mode<synchronous>, transform_indices = @transform_4, window_bounds = array<i64: 1, 512>}, {pipeline_mode = #tpu.pipeline_mode<synchronous>, transform_indices = @transform_5, window_bounds = array<i64: 512, 256>}, {pipeline_mode = #tpu.pipeline_mode<synchronous>, transform_indices = @transform_6, window_bounds = array<i64: 1, 256>}, {pipeline_mode = #tpu.pipeline_mode<synchronous>, transform_indices = @transform_7, window_bounds = array<i64: 256, 256>}, {pipeline_mode = #tpu.pipeline_mode<synchronous>, transform_indices = @transform_8, window_bounds = array<i64: 1, 256>}, {pipeline_mode = #tpu.pipeline_mode<synchronous>, transform_indices = @transform_9, window_bounds = array<i64: 256, 128>}, {pipeline_mode = #tpu.pipeline_mode<synchronous>, transform_indices = @transform_10, window_bounds = array<i64: 1, 128>}, {pipeline_mode = #tpu.pipeline_mode<synchronous>, transform_indices = @transform_11, window_bounds = array<i64: 128, 128>}, {pipeline_mode = #tpu.pipeline_mode<synchronous>, transform_indices = @transform_12, window_bounds = array<i64: 1, 128>}, {pipeline_mode = #tpu.pipeline_mode<synchronous>, transform_indices = @transform_13, window_bounds = array<i64: 128, 128>}, {pipeline_mode = #tpu.pipeline_mode<synchronous>, transform_indices = @transform_14, window_bounds = array<i64: 1, 128>}, {pipeline_mode = #tpu.pipeline_mode<synchronous>, transform_indices = @transform_15, window_bounds = array<i64: 128, 128>}, {pipeline_mode = #tpu.pipeline_mode<synchronous>, transform_indices = @transform_16, window_bounds = array<i64: 1, 128>}, {transform_indices = @transform_17, window_bounds = array<i64: 8, 128>}]} {
    %c0 = arith.constant 0 : index
    %c0_0 = arith.constant 0 : index
    %0 = vector.load %arg1[%c0, %c0_0] : memref<8x128xf32, #tpu.memory_space<vmem>>, vector<8x128xf32>
    %c0_1 = arith.constant 0 : index
    %c0_2 = arith.constant 0 : index
    %1 = vector.load %arg2[%c0_1, %c0_2] : memref<128x768xbf16, #tpu.memory_space<vmem>>, vector<128x768xbf16>
    %c0_3 = arith.constant 0 : index
    %c0_4 = arith.constant 0 : index
    %2 = vector.load %arg3[%c0_3, %c0_4] : memref<1x768xf32, #tpu.memory_space<vmem>>, vector<1x768xf32>
    %3 = arith.truncf %0 : vector<8x128xf32> to vector<8x128xbf16>
    %cst = arith.constant dense<0.000000e+00> : vector<8x768xf32>
    %4 = tpu.matmul %3, %1, %cst {dimension_numbers = #tpu.dot_dimension_numbers<[1], [0], [0], [1], [0, 0, 1, 1], [], []>} : vector<8x128xbf16>, vector<128x768xbf16>, vector<8x768xf32> -> vector<8x768xf32>
    %5 = vector.broadcast %2 : vector<1x768xf32> to vector<8x768xf32>
    %6 = arith.addf %4, %5 : vector<8x768xf32>
    %7 = math.tanh %6 : vector<8x768xf32>
    %c0_5 = arith.constant 0 : index
    %c0_6 = arith.constant 0 : index
    %8 = vector.load %arg4[%c0_5, %c0_6] : memref<768x512xbf16, #tpu.memory_space<vmem>>, vector<768x512xbf16>
    %c0_7 = arith.constant 0 : index
    %c0_8 = arith.constant 0 : index
    %9 = vector.load %arg5[%c0_7, %c0_8] : memref<1x512xf32, #tpu.memory_space<vmem>>, vector<1x512xf32>
    %10 = arith.truncf %7 : vector<8x768xf32> to vector<8x768xbf16>
    %cst_9 = arith.constant dense<0.000000e+00> : vector<8x512xf32>
    %11 = tpu.matmul %10, %8, %cst_9 {dimension_numbers = #tpu.dot_dimension_numbers<[1], [0], [0], [1], [0, 0, 1, 1], [], []>} : vector<8x768xbf16>, vector<768x512xbf16>, vector<8x512xf32> -> vector<8x512xf32>
    %12 = vector.broadcast %9 : vector<1x512xf32> to vector<8x512xf32>
    %13 = arith.addf %11, %12 : vector<8x512xf32>
    %14 = math.tanh %13 : vector<8x512xf32>
    %c0_10 = arith.constant 0 : index
    %c0_11 = arith.constant 0 : index
    %15 = vector.load %arg6[%c0_10, %c0_11] : memref<512x256xbf16, #tpu.memory_space<vmem>>, vector<512x256xbf16>
    %c0_12 = arith.constant 0 : index
    %c0_13 = arith.constant 0 : index
    %16 = vector.load %arg7[%c0_12, %c0_13] : memref<1x256xf32, #tpu.memory_space<vmem>>, vector<1x256xf32>
    %17 = arith.truncf %14 : vector<8x512xf32> to vector<8x512xbf16>
    %cst_14 = arith.constant dense<0.000000e+00> : vector<8x256xf32>
    %18 = tpu.matmul %17, %15, %cst_14 {dimension_numbers = #tpu.dot_dimension_numbers<[1], [0], [0], [1], [0, 0, 1, 1], [], []>} : vector<8x512xbf16>, vector<512x256xbf16>, vector<8x256xf32> -> vector<8x256xf32>
    %19 = vector.broadcast %16 : vector<1x256xf32> to vector<8x256xf32>
    %20 = arith.addf %18, %19 : vector<8x256xf32>
    %21 = math.tanh %20 : vector<8x256xf32>
    %c0_15 = arith.constant 0 : index
    %c0_16 = arith.constant 0 : index
    %22 = vector.load %arg8[%c0_15, %c0_16] : memref<256x256xbf16, #tpu.memory_space<vmem>>, vector<256x256xbf16>
    %c0_17 = arith.constant 0 : index
    %c0_18 = arith.constant 0 : index
    %23 = vector.load %arg9[%c0_17, %c0_18] : memref<1x256xf32, #tpu.memory_space<vmem>>, vector<1x256xf32>
    %24 = arith.truncf %21 : vector<8x256xf32> to vector<8x256xbf16>
    %cst_19 = arith.constant dense<0.000000e+00> : vector<8x256xf32>
    %25 = tpu.matmul %24, %22, %cst_19 {dimension_numbers = #tpu.dot_dimension_numbers<[1], [0], [0], [1], [0, 0, 1, 1], [], []>} : vector<8x256xbf16>, vector<256x256xbf16>, vector<8x256xf32> -> vector<8x256xf32>
    %26 = vector.broadcast %23 : vector<1x256xf32> to vector<8x256xf32>
    %27 = arith.addf %25, %26 : vector<8x256xf32>
    %28 = math.tanh %27 : vector<8x256xf32>
    %c0_20 = arith.constant 0 : index
    %c0_21 = arith.constant 0 : index
    %29 = vector.load %arg10[%c0_20, %c0_21] : memref<256x128xbf16, #tpu.memory_space<vmem>>, vector<256x128xbf16>
    %c0_22 = arith.constant 0 : index
    %c0_23 = arith.constant 0 : index
    %30 = vector.load %arg11[%c0_22, %c0_23] : memref<1x128xf32, #tpu.memory_space<vmem>>, vector<1x128xf32>
    %31 = arith.truncf %28 : vector<8x256xf32> to vector<8x256xbf16>
    %cst_24 = arith.constant dense<0.000000e+00> : vector<8x128xf32>
    %32 = tpu.matmul %31, %29, %cst_24 {dimension_numbers = #tpu.dot_dimension_numbers<[1], [0], [0], [1], [0, 0, 1, 1], [], []>} : vector<8x256xbf16>, vector<256x128xbf16>, vector<8x128xf32> -> vector<8x128xf32>
    %33 = vector.broadcast %30 : vector<1x128xf32> to vector<8x128xf32>
    %34 = arith.addf %32, %33 : vector<8x128xf32>
    %35 = math.tanh %34 : vector<8x128xf32>
    %c0_25 = arith.constant 0 : index
    %c0_26 = arith.constant 0 : index
    %36 = vector.load %arg12[%c0_25, %c0_26] : memref<128x128xbf16, #tpu.memory_space<vmem>>, vector<128x128xbf16>
    %c0_27 = arith.constant 0 : index
    %c0_28 = arith.constant 0 : index
    %37 = vector.load %arg13[%c0_27, %c0_28] : memref<1x128xf32, #tpu.memory_space<vmem>>, vector<1x128xf32>
    %38 = arith.truncf %35 : vector<8x128xf32> to vector<8x128xbf16>
    %cst_29 = arith.constant dense<0.000000e+00> : vector<8x128xf32>
    %39 = tpu.matmul %38, %36, %cst_29 {dimension_numbers = #tpu.dot_dimension_numbers<[1], [0], [0], [1], [0, 0, 1, 1], [], []>} : vector<8x128xbf16>, vector<128x128xbf16>, vector<8x128xf32> -> vector<8x128xf32>
    %40 = vector.broadcast %37 : vector<1x128xf32> to vector<8x128xf32>
    %41 = arith.addf %39, %40 : vector<8x128xf32>
    %42 = math.tanh %41 : vector<8x128xf32>
    %c0_30 = arith.constant 0 : index
    %c0_31 = arith.constant 0 : index
    %43 = vector.load %arg14[%c0_30, %c0_31] : memref<128x128xbf16, #tpu.memory_space<vmem>>, vector<128x128xbf16>
    %c0_32 = arith.constant 0 : index
    %c0_33 = arith.constant 0 : index
    %44 = vector.load %arg15[%c0_32, %c0_33] : memref<1x128xf32, #tpu.memory_space<vmem>>, vector<1x128xf32>
    %45 = arith.truncf %42 : vector<8x128xf32> to vector<8x128xbf16>
    %cst_34 = arith.constant dense<0.000000e+00> : vector<8x128xf32>
    %46 = tpu.matmul %45, %43, %cst_34 {dimension_numbers = #tpu.dot_dimension_numbers<[1], [0], [0], [1], [0, 0, 1, 1], [], []>} : vector<8x128xbf16>, vector<128x128xbf16>, vector<8x128xf32> -> vector<8x128xf32>
    %47 = vector.broadcast %44 : vector<1x128xf32> to vector<8x128xf32>
    %48 = arith.addf %46, %47 : vector<8x128xf32>
    %49 = math.tanh %48 : vector<8x128xf32>
    %c0_35 = arith.constant 0 : index
    %c0_36 = arith.constant 0 : index
    %50 = vector.load %arg16[%c0_35, %c0_36] : memref<128x128xbf16, #tpu.memory_space<vmem>>, vector<128x128xbf16>
    %c0_37 = arith.constant 0 : index
    %c0_38 = arith.constant 0 : index
    %51 = vector.load %arg17[%c0_37, %c0_38] : memref<1x128xf32, #tpu.memory_space<vmem>>, vector<1x128xf32>
    %52 = arith.truncf %49 : vector<8x128xf32> to vector<8x128xbf16>
    %cst_39 = arith.constant dense<0.000000e+00> : vector<8x128xf32>
    %53 = tpu.matmul %52, %50, %cst_39 {dimension_numbers = #tpu.dot_dimension_numbers<[1], [0], [0], [1], [0, 0, 1, 1], [], []>} : vector<8x128xbf16>, vector<128x128xbf16>, vector<8x128xf32> -> vector<8x128xf32>
    %54 = vector.broadcast %51 : vector<1x128xf32> to vector<8x128xf32>
    %55 = arith.addf %53, %54 : vector<8x128xf32>
    %c0_40 = arith.constant 0 : index
    %c0_41 = arith.constant 0 : index
    %56 = vector.load %arg18[%c0_40, %c0_41] : memref<8x128xf32, #tpu.memory_space<vmem>>, vector<8x128xf32>
    tpu.vector_store %arg18[%c0_40, %c0_41], %55 {strides = array<i32>} : memref<8x128xf32, #tpu.memory_space<vmem>>, vector<8x128xf32>,
    return
  }
  func.func @transform_0(%arg0: i32) -> (i32, i32) {
    %c0_i32 = arith.constant 0 : i32
    %c0_i32_0 = arith.constant 0 : i32
    return %arg0, %c0_i32 : i32, i32
  }
  func.func @transform_1(%arg0: i32) -> (i32, i32) {
    %c0_i32 = arith.constant 0 : i32
    %c0_i32_0 = arith.constant 0 : i32
    %c0_i32_1 = arith.constant 0 : i32
    return %c0_i32, %c0_i32_0 : i32, i32
  }
  func.func @transform_2(%arg0: i32) -> (i32, i32) {
    %c0_i32 = arith.constant 0 : i32
    %c0_i32_0 = arith.constant 0 : i32
    %c0_i32_1 = arith.constant 0 : i32
    return %c0_i32, %c0_i32_0 : i32, i32
  }
  func.func @transform_3(%arg0: i32) -> (i32, i32) {
    %c0_i32 = arith.constant 0 : i32
    %c0_i32_0 = arith.constant 0 : i32
    %c0_i32_1 = arith.constant 0 : i32
    return %c0_i32, %c0_i32_0 : i32, i32
  }
  func.func @transform_4(%arg0: i32) -> (i32, i32) {
    %c0_i32 = arith.constant 0 : i32
    %c0_i32_0 = arith.constant 0 : i32
    %c0_i32_1 = arith.constant 0 : i32
    return %c0_i32, %c0_i32_0 : i32, i32
  }
  func.func @transform_5(%arg0: i32) -> (i32, i32) {
    %c0_i32 = arith.constant 0 : i32
    %c0_i32_0 = arith.constant 0 : i32
    %c0_i32_1 = arith.constant 0 : i32
    return %c0_i32, %c0_i32_0 : i32, i32
  }
  func.func @transform_6(%arg0: i32) -> (i32, i32) {
    %c0_i32 = arith.constant 0 : i32
    %c0_i32_0 = arith.constant 0 : i32
    %c0_i32_1 = arith.constant 0 : i32
    return %c0_i32, %c0_i32_0 : i32, i32
  }
  func.func @transform_7(%arg0: i32) -> (i32, i32) {
    %c0_i32 = arith.constant 0 : i32
    %c0_i32_0 = arith.constant 0 : i32
    %c0_i32_1 = arith.constant 0 : i32
    return %c0_i32, %c0_i32_0 : i32, i32
  }
  func.func @transform_8(%arg0: i32) -> (i32, i32) {
    %c0_i32 = arith.constant 0 : i32
    %c0_i32_0 = arith.constant 0 : i32
    %c0_i32_1 = arith.constant 0 : i32
    return %c0_i32, %c0_i32_0 : i32, i32
  }
  func.func @transform_9(%arg0: i32) -> (i32, i32) {
    %c0_i32 = arith.constant 0 : i32
    %c0_i32_0 = arith.constant 0 : i32
    %c0_i32_1 = arith.constant 0 : i32
    return %c0_i32, %c0_i32_0 : i32, i32
  }
  func.func @transform_10(%arg0: i32) -> (i32, i32) {
    %c0_i32 = arith.constant 0 : i32
    %c0_i32_0 = arith.constant 0 : i32
    %c0_i32_1 = arith.constant 0 : i32
    return %c0_i32, %c0_i32_0 : i32, i32
  }
  func.func @transform_11(%arg0: i32) -> (i32, i32) {
    %c0_i32 = arith.constant 0 : i32
    %c0_i32_0 = arith.constant 0 : i32
    %c0_i32_1 = arith.constant 0 : i32
    return %c0_i32, %c0_i32_0 : i32, i32
  }
  func.func @transform_12(%arg0: i32) -> (i32, i32) {
    %c0_i32 = arith.constant 0 : i32
    %c0_i32_0 = arith.constant 0 : i32
    %c0_i32_1 = arith.constant 0 : i32
    return %c0_i32, %c0_i32_0 : i32, i32
  }
  func.func @transform_13(%arg0: i32) -> (i32, i32) {
    %c0_i32 = arith.constant 0 : i32
    %c0_i32_0 = arith.constant 0 : i32
    %c0_i32_1 = arith.constant 0 : i32
    return %c0_i32, %c0_i32_0 : i32, i32
  }
  func.func @transform_14(%arg0: i32) -> (i32, i32) {
    %c0_i32 = arith.constant 0 : i32
    %c0_i32_0 = arith.constant 0 : i32
    %c0_i32_1 = arith.constant 0 : i32
    return %c0_i32, %c0_i32_0 : i32, i32
  }
  func.func @transform_15(%arg0: i32) -> (i32, i32) {
    %c0_i32 = arith.constant 0 : i32
    %c0_i32_0 = arith.constant 0 : i32
    %c0_i32_1 = arith.constant 0 : i32
    return %c0_i32, %c0_i32_0 : i32, i32
  }
  func.func @transform_16(%arg0: i32) -> (i32, i32) {
    %c0_i32 = arith.constant 0 : i32
    %c0_i32_0 = arith.constant 0 : i32
    %c0_i32_1 = arith.constant 0 : i32
    return %c0_i32, %c0_i32_0 : i32, i32
  }
  func.func @transform_17(%arg0: i32) -> (i32, i32) {
    %c0_i32 = arith.constant 0 : i32
    %c0_i32_0 = arith.constant 0 : i32
    return %arg0, %c0_i32 : i32, i32
  }
}

</mosaic_0001>

<llo_original>
// kernel: large_pinn_net.1
$region0: #{large_pinn_net.1}
  #allocation0 [shape = 'u32[]', space=smem, size = 0x4, offset = 0x4, fixed_abs, tag = 'smem constant byte address 0x4 - core index']
  #allocation1 [shape = 'u32[144,128]{1,0:T(1,128)}', space=vmem, size = 0x12000, scoped, tag = 'internal scratch']
  %s0 = inlined_call_operand.vmem [shape: f32[8,128], index: 0, kind: input, shape index: {}]
  %s1 = inlined_call_operand.hbm [shape: bf16[128,768], index: 1, kind: input, shape index: {}]
  %s2 = inlined_call_operand.vmem [shape: f32[1,768], index: 2, kind: input, shape index: {}]
  %s3 = inlined_call_operand.hbm [shape: bf16[768,512], index: 3, kind: input, shape index: {}]
  %s4 = inlined_call_operand.vmem [shape: f32[1,512], index: 4, kind: input, shape index: {}]
  %s5 = inlined_call_operand.hbm [shape: bf16[512,256], index: 5, kind: input, shape index: {}]
  %s6 = inlined_call_operand.vmem [shape: f32[1,256], index: 6, kind: input, shape index: {}]
  %s7 = inlined_call_operand.hbm [shape: bf16[256,256], index: 7, kind: input, shape index: {}]
  %s8 = inlined_call_operand.vmem [shape: f32[1,256], index: 8, kind: input, shape index: {}]
  %s9 = inlined_call_operand.hbm [shape: bf16[256,128], index: 9, kind: input, shape index: {}]
  %s10 = inlined_call_operand.vmem [shape: f32[1,128], index: 10, kind: input, shape index: {}]
  %s11 = inlined_call_operand.vmem [shape: bf16[128,128], index: 11, kind: input, shape index: {}]
  %s12 = inlined_call_operand.vmem [shape: f32[1,128], index: 12, kind: input, shape index: {}]
  %s13 = inlined_call_operand.hbm [shape: bf16[128,128], index: 13, kind: input, shape index: {}]
  %s14 = inlined_call_operand.vmem [shape: f32[1,128], index: 14, kind: input, shape index: {}]
  %s15 = inlined_call_operand.hbm [shape: bf16[128,128], index: 15, kind: input, shape index: {}]
  %s16 = inlined_call_operand.vmem [shape: f32[1,128], index: 16, kind: input, shape index: {}]
  %s17 = inlined_call_operand.vmem [shape: f32[8,128], index: 17, kind: output, shape index: {}]
  %s18 = sld [smem:[#allocation0]]
  $region106: #{large_pinn_net.1} parent=0
    _
  %s20 = ssub.s32 1, %s18
  %s21 = scalar_select 0, %s20, %s18
  $region1: #{large_pinn_net.1} parent=0
    #allocation2 [shape = 'u8[196608]{0}', space=vmem, size = 0x30000, scoped, tag = 'input window, operand 1, single buffered']
    #allocation3 [shape = 's32[1]{0}', space=sflag, size = 0x4, scoped, tag = 'scoped memory for large_pinn_net.1']
    #allocation4 [shape = 'u8[786432]{0}', space=vmem, size = 0xc0000, scoped, tag = 'input window, operand 3, single buffered']
    #allocation5 [shape = 's32[1]{0}', space=sflag, size = 0x4, scoped, tag = 'scoped memory for large_pinn_net.1']
    #allocation6 [shape = 'u8[262144]{0}', space=vmem, size = 0x40000, scoped, tag = 'input window, operand 5, single buffered']
    #allocation7 [shape = 'u8[131072]{0}', space=vmem, size = 0x20000, scoped, tag = 'input window, operand 7, single buffered']
    #allocation8 [shape = 's32[1]{0}', space=sflag, size = 0x4, scoped, tag = 'scoped memory for large_pinn_net.1']
    #allocation9 [shape = 'u8[65536]{0}', space=vmem, size = 0x10000, scoped, tag = 'input window, operand 9, single buffered']
    #allocation10 [shape = 'u8[32768]{0}', space=vmem, size = 0x8000, scoped, tag = 'input window, operand 13, single buffered']
    #allocation11 [shape = 's32[1]{0}', space=sflag, size = 0x4, scoped, tag = 'scoped memory for large_pinn_net.1']
    #allocation12 [shape = 'u8[32768]{0}', space=vmem, size = 0x8000, scoped, tag = 'input window, operand 15, single buffered']
    %22 = vsyncpa [#allocation3], 0
    %23 = vsyncpa [#allocation5], 0
    %24 = vsyncpa [#allocation8], 0
    %25 = vsyncpa [#allocation11], 0
    // Predicated region
    $region2: #{large_pinn_net.1} parent=1 // pred_check
      _
    $region3: #{large_pinn_net.1} parent=1 // pred_check_branch
      %27 = sbr.rel (0) target = $region5
    $region4: #{large_pinn_net.1} parent=1 // pred_region
      _
    $region5: #{large_pinn_net.1} parent=1 // pred_fallthru
      _
    // Predicated region
    $region6: #{large_pinn_net.1} parent=1 // pred_check
      _
    $region7: #{large_pinn_net.1} parent=1 // pred_check_branch
      %29 = sbr.rel (0) target = $region9
    $region8: #{large_pinn_net.1} parent=1 // pred_region
      %s31 = ssub.s32 6144, 6144
      %32 = vsyncadd [#allocation3], %s31
      %s33 = sshll.u32 [#allocation2], 4
      %s34 = int_to_ptr.vmem [resolvable:$true] %s33
      %39 = dma.hbm_to_vmem [thread:$0]  %s1, 6144, %s34, [#allocation3], 384, 384, 24
    $region9: #{large_pinn_net.1} parent=1 // pred_fallthru
      _
    // Predicated region
    $region10: #{large_pinn_net.1} parent=1 // pred_check
      _
    $region11: #{large_pinn_net.1} parent=1 // pred_check_branch
      %41 = sbr.rel (0) target = $region13
    $region12: #{large_pinn_net.1} parent=1 // pred_region
      _
    $region13: #{large_pinn_net.1} parent=1 // pred_fallthru
      _
    // Predicated region
    $region14: #{large_pinn_net.1} parent=1 // pred_check
      _
    $region15: #{large_pinn_net.1} parent=1 // pred_check_branch
      %43 = sbr.rel (0) target = $region17
    $region16: #{large_pinn_net.1} parent=1 // pred_region
      %s45 = ssub.s32 24576, 24576
      %46 = vsyncadd [#allocation5], %s45
      %s47 = sshll.u32 [#allocation4], 4
      %s48 = int_to_ptr.vmem [resolvable:$true] %s47
      %53 = dma.hbm_to_vmem [thread:$0]  %s3, 24576, %s48, [#allocation5], 256, 256, 16
    $region17: #{large_pinn_net.1} parent=1 // pred_fallthru
      _
    // Predicated region
    $region18: #{large_pinn_net.1} parent=1 // pred_check
      _
    $region19: #{large_pinn_net.1} parent=1 // pred_check_branch
      %55 = sbr.rel (0) target = $region21
    $region20: #{large_pinn_net.1} parent=1 // pred_region
      _
    $region21: #{large_pinn_net.1} parent=1 // pred_fallthru
      _
    // Predicated region
    $region22: #{large_pinn_net.1} parent=1 // pred_check
      _
    $region23: #{large_pinn_net.1} parent=1 // pred_check_branch
      %57 = sbr.rel (0) target = $region25
    $region24: #{large_pinn_net.1} parent=1 // pred_region
      %s59 = ssub.s32 8192, 8192
      %60 = vsyncadd [#allocation5], %s59
      %s61 = sshll.u32 [#allocation6], 4
      %s62 = int_to_ptr.vmem [resolvable:$true] %s61
      %67 = dma.hbm_to_vmem [thread:$0]  %s5, 8192, %s62, [#allocation5], 128, 128, 8
    $region25: #{large_pinn_net.1} parent=1 // pred_fallthru
      _
    // Predicated region
    $region26: #{large_pinn_net.1} parent=1 // pred_check
      _
    $region27: #{large_pinn_net.1} parent=1 // pred_check_branch
      %69 = sbr.rel (0) target = $region29
    $region28: #{large_pinn_net.1} parent=1 // pred_region
      _
    $region29: #{large_pinn_net.1} parent=1 // pred_fallthru
      _
    // Predicated region
    $region30: #{large_pinn_net.1} parent=1 // pred_check
      _
    $region31: #{large_pinn_net.1} parent=1 // pred_check_branch
      %71 = sbr.rel (0) target = $region33
    $region32: #{large_pinn_net.1} parent=1 // pred_region
      %s73 = ssub.s32 4096, 4096
      %74 = vsyncadd [#allocation8], %s73
      %s75 = sshll.u32 [#allocation7], 4
      %s76 = int_to_ptr.vmem [resolvable:$true] %s75
      %81 = dma.hbm_to_vmem [thread:$0]  %s7, 4096, %s76, [#allocation8], 128, 128, 8
    $region33: #{large_pinn_net.1} parent=1 // pred_fallthru
      _
    // Predicated region
    $region34: #{large_pinn_net.1} parent=1 // pred_check
      _
    $region35: #{large_pinn_net.1} parent=1 // pred_check_branch
      %83 = sbr.rel (0) target = $region37
    $region36: #{large_pinn_net.1} parent=1 // pred_region
      _
    $region37: #{large_pinn_net.1} parent=1 // pred_fallthru
      _
    // Predicated region
    $region38: #{large_pinn_net.1} parent=1 // pred_check
      _
    $region39: #{large_pinn_net.1} parent=1 // pred_check_branch
      %85 = sbr.rel (0) target = $region41
    $region40: #{large_pinn_net.1} parent=1 // pred_region
      %s87 = ssub.s32 2048, 2048
      %88 = vsyncadd [#allocation8], %s87
      %s89 = sshll.u32 [#allocation9], 4
      %s90 = int_to_ptr.vmem [resolvable:$true] %s89
      %95 = dma.hbm_to_vmem [thread:$0]  %s9, 2048, %s90, [#allocation8], 64, 64, 4
    $region41: #{large_pinn_net.1} parent=1 // pred_fallthru
      _
    // Predicated region
    $region42: #{large_pinn_net.1} parent=1 // pred_check
      _
    $region43: #{large_pinn_net.1} parent=1 // pred_check_branch
      %97 = sbr.rel (0) target = $region45
    $region44: #{large_pinn_net.1} parent=1 // pred_region
      _
    $region45: #{large_pinn_net.1} parent=1 // pred_fallthru
      _
    // Predicated region
    $region46: #{large_pinn_net.1} parent=1 // pred_check
      _
    $region47: #{large_pinn_net.1} parent=1 // pred_check_branch
      %99 = sbr.rel (0) target = $region49
    $region48: #{large_pinn_net.1} parent=1 // pred_region
      _
    $region49: #{large_pinn_net.1} parent=1 // pred_fallthru
      _
    // Predicated region
    $region50: #{large_pinn_net.1} parent=1 // pred_check
      _
    $region51: #{large_pinn_net.1} parent=1 // pred_check_branch
      %101 = sbr.rel (0) target = $region53
    $region52: #{large_pinn_net.1} parent=1 // pred_region
      _
    $region53: #{large_pinn_net.1} parent=1 // pred_fallthru
      _
    // Predicated region
    $region54: #{large_pinn_net.1} parent=1 // pred_check
      _
    $region55: #{large_pinn_net.1} parent=1 // pred_check_branch
      %103 = sbr.rel (0) target = $region57
    $region56: #{large_pinn_net.1} parent=1 // pred_region
      %s105 = ssub.s32 1024, 1024
      %106 = vsyncadd [#allocation11], %s105
      %s107 = sshll.u32 [#allocation10], 4
      %s108 = int_to_ptr.vmem [resolvable:$true] %s107
      %113 = dma.hbm_to_vmem [thread:$0]  %s13, 1024, %s108, [#allocation11], 64, 64, 4
    $region57: #{large_pinn_net.1} parent=1 // pred_fallthru
      _
    // Predicated region
    $region58: #{large_pinn_net.1} parent=1 // pred_check
      _
    $region59: #{large_pinn_net.1} parent=1 // pred_check_branch
      %115 = sbr.rel (0) target = $region61
    $region60: #{large_pinn_net.1} parent=1 // pred_region
      _
    $region61: #{large_pinn_net.1} parent=1 // pred_fallthru
      _
    // Predicated region
    $region62: #{large_pinn_net.1} parent=1 // pred_check
      _
    $region63: #{large_pinn_net.1} parent=1 // pred_check_branch
      %117 = sbr.rel (0) target = $region65
    $region64: #{large_pinn_net.1} parent=1 // pred_region
      %s119 = ssub.s32 1024, 1024
      %120 = vsyncadd [#allocation11], %s119
      %s121 = sshll.u32 [#allocation12], 4
      %s122 = int_to_ptr.vmem [resolvable:$true] %s121
      %127 = dma.hbm_to_vmem [thread:$0]  %s15, 1024, %s122, [#allocation11], 64, 64, 4
    $region65: #{large_pinn_net.1} parent=1 // pred_fallthru
      _
    // Predicated region
    $region66: #{large_pinn_net.1} parent=1 // pred_check
      _
    $region67: #{large_pinn_net.1} parent=1 // pred_check_branch
      %129 = sbr.rel (0) target = $region69
    $region68: #{large_pinn_net.1} parent=1 // pred_region
      _
    $region69: #{large_pinn_net.1} parent=1 // pred_fallthru
      _
    // Predicated region
    $region70: #{large_pinn_net.1} parent=1 // pred_check
      _
    $region71: #{large_pinn_net.1} parent=1 // pred_check_branch
      %131 = sbr.rel (0) target = $region73
    $region72: #{large_pinn_net.1} parent=1 // pred_region
      %132 = dma.done [#allocation3], 6144
    $region73: #{large_pinn_net.1} parent=1 // pred_fallthru
      _
    // Predicated region
    $region74: #{large_pinn_net.1} parent=1 // pred_check
      _
    $region75: #{large_pinn_net.1} parent=1 // pred_check_branch
      %134 = sbr.rel (0) target = $region77
    $region76: #{large_pinn_net.1} parent=1 // pred_region
      %135 = dma.done [#allocation5], 24576
    $region77: #{large_pinn_net.1} parent=1 // pred_fallthru
      _
    // Predicated region
    $region78: #{large_pinn_net.1} parent=1 // pred_check
      _
    $region79: #{large_pinn_net.1} parent=1 // pred_check_branch
      %137 = sbr.rel (0) target = $region81
    $region80: #{large_pinn_net.1} parent=1 // pred_region
      %138 = dma.done [#allocation5], 8192
    $region81: #{large_pinn_net.1} parent=1 // pred_fallthru
      _
    // Predicated region
    $region82: #{large_pinn_net.1} parent=1 // pred_check
      _
    $region83: #{large_pinn_net.1} parent=1 // pred_check_branch
      %140 = sbr.rel (0) target = $region85
    $region84: #{large_pinn_net.1} parent=1 // pred_region
      %141 = dma.done [#allocation8], 4096
    $region85: #{large_pinn_net.1} parent=1 // pred_fallthru
      _
    // Predicated region
    $region86: #{large_pinn_net.1} parent=1 // pred_check
      _
    $region87: #{large_pinn_net.1} parent=1 // pred_check_branch
      %143 = sbr.rel (0) target = $region89
    $region88: #{large_pinn_net.1} parent=1 // pred_region
      %144 = dma.done [#allocation8], 2048
    $region89: #{large_pinn_net.1} parent=1 // pred_fallthru
      _
    // Predicated region
    $region90: #{large_pinn_net.1} parent=1 // pred_check
      _
    $region91: #{large_pinn_net.1} parent=1 // pred_check_branch
      %146 = sbr.rel (0) target = $region93
    $region92: #{large_pinn_net.1} parent=1 // pred_region
      %147 = dma.done [#allocation11], 1024
    $region93: #{large_pinn_net.1} parent=1 // pred_fallthru
      _
    // Predicated region
    $region94: #{large_pinn_net.1} parent=1 // pred_check
      _
    $region95: #{large_pinn_net.1} parent=1 // pred_check_branch
      %149 = sbr.rel (0) target = $region97
    $region96: #{large_pinn_net.1} parent=1 // pred_region
      %150 = dma.done [#allocation11], 1024
    $region97: #{large_pinn_net.1} parent=1 // pred_fallthru
      _
    %v152 = vld [vmem:[%s0] sm:$0xff]
    %v153 = vld [vmem:[#allocation2] sm:$0xff]
    %v154 = vld [vmem:[#allocation2 + $0x8] sm:$0xff]
    %v155 = vld [vmem:[#allocation2 + $0x10] sm:$0xff]
    %v156 = vld [vmem:[#allocation2 + $0x18] sm:$0xff]
    %v157 = vld [vmem:[#allocation2 + $0x20] sm:$0xff]
    %v158 = vld [vmem:[#allocation2 + $0x28] sm:$0xff]
    %v159 = vld [vmem:[#allocation2 + $0x30] sm:$0xff]
    %v160 = vld [vmem:[#allocation2 + $0x38] sm:$0xff]
    %v161 = vld [vmem:[#allocation2 + $0x40] sm:$0xff]
    %v162 = vld [vmem:[#allocation2 + $0x48] sm:$0xff]
    %v163 = vld [vmem:[#allocation2 + $0x50] sm:$0xff]
    %v164 = vld [vmem:[#allocation2 + $0x58] sm:$0xff]
    %v165 = vld [vmem:[#allocation2 + $0x60] sm:$0xff]
    %v166 = vld [vmem:[#allocation2 + $0x68] sm:$0xff]
    %v167 = vld [vmem:[#allocation2 + $0x70] sm:$0xff]
    %v168 = vld [vmem:[#allocation2 + $0x78] sm:$0xff]
    %v169 = vld [vmem:[#allocation2 + $0x80] sm:$0xff]
    %v170 = vld [vmem:[#allocation2 + $0x88] sm:$0xff]
    %v171 = vld [vmem:[#allocation2 + $0x90] sm:$0xff]
    %v172 = vld [vmem:[#allocation2 + $0x98] sm:$0xff]
    %v173 = vld [vmem:[#allocation2 + $0xa0] sm:$0xff]
    %v174 = vld [vmem:[#allocation2 + $0xa8] sm:$0xff]
    %v175 = vld [vmem:[#allocation2 + $0xb0] sm:$0xff]
    %v176 = vld [vmem:[#allocation2 + $0xb8] sm:$0xff]
    %v177 = vld [vmem:[#allocation2 + $0xc0] sm:$0xff]
    %v178 = vld [vmem:[#allocation2 + $0xc8] sm:$0xff]
    %v179 = vld [vmem:[#allocation2 + $0xd0] sm:$0xff]
    %v180 = vld [vmem:[#allocation2 + $0xd8] sm:$0xff]
    %v181 = vld [vmem:[#allocation2 + $0xe0] sm:$0xff]
    %v182 = vld [vmem:[#allocation2 + $0xe8] sm:$0xff]
    %v183 = vld [vmem:[#allocation2 + $0xf0] sm:$0xff]
    %v184 = vld [vmem:[#allocation2 + $0xf8] sm:$0xff]
    %v185 = vld [vmem:[#allocation2 + $0x100] sm:$0xff]
    %v186 = vld [vmem:[#allocation2 + $0x108] sm:$0xff]
    %v187 = vld [vmem:[#allocation2 + $0x110] sm:$0xff]
    %v188 = vld [vmem:[#allocation2 + $0x118] sm:$0xff]
    %v189 = vld [vmem:[#allocation2 + $0x120] sm:$0xff]
    %v190 = vld [vmem:[#allocation2 + $0x128] sm:$0xff]
    %v191 = vld [vmem:[#allocation2 + $0x130] sm:$0xff]
    %v192 = vld [vmem:[#allocation2 + $0x138] sm:$0xff]
    %v193 = vld [vmem:[#allocation2 + $0x140] sm:$0xff]
    %v194 = vld [vmem:[#allocation2 + $0x148] sm:$0xff]
    %v195 = vld [vmem:[#allocation2 + $0x150] sm:$0xff]
    %v196 = vld [vmem:[#allocation2 + $0x158] sm:$0xff]
    %v197 = vld [vmem:[#allocation2 + $0x160] sm:$0xff]
    %v198 = vld [vmem:[#allocation2 + $0x168] sm:$0xff]
    %v199 = vld [vmem:[#allocation2 + $0x170] sm:$0xff]
    %v200 = vld [vmem:[#allocation2 + $0x178] sm:$0xff]
    %v201 = vld [vmem:[%s2] sm:$0x3f]
    %v202 = vpack.c.bf16 %v152, %v152
    %v204 = vlaneseq
    %v205 = vshrl.u32 %v204, 7
    %v206 = vsub.s32 0, %v205
    %v207 = vrot.slane %v201, %v206
    %v208 = vlaneseq
    %v209 = vshrl.u32 %v208, 7
    %v210 = vsub.s32 1, %v209
    %v211 = vrot.slane %v201, %v210
    %v212 = vlaneseq
    %v213 = vshrl.u32 %v212, 7
    %v214 = vsub.s32 2, %v213
    %v215 = vrot.slane %v201, %v214
    %v216 = vlaneseq
    %v217 = vshrl.u32 %v216, 7
    %v218 = vsub.s32 3, %v217
    %v219 = vrot.slane %v201, %v218
    %v220 = vlaneseq
    %v221 = vshrl.u32 %v220, 7
    %v222 = vsub.s32 4, %v221
    %v223 = vrot.slane %v201, %v222
    %v224 = vlaneseq
    %v225 = vshrl.u32 %v224, 7
    %v226 = vsub.s32 5, %v225
    %v227 = vrot.slane %v201, %v226
    %v282 = vunpack.c.l.b16 %v153
    %v283 = vunpack.c.h.b16 %v153
    %v284 = vunpack.c.l.b16 %v154
    %v285 = vunpack.c.h.b16 %v154
    %v286 = vunpack.c.l.b16 %v155
    %v287 = vunpack.c.h.b16 %v155
    %v288 = vunpack.c.l.b16 %v156
    %v289 = vunpack.c.h.b16 %v156
    %v290 = vunpack.c.l.b16 %v157
    %v291 = vunpack.c.h.b16 %v157
    %v292 = vunpack.c.l.b16 %v158
    %v293 = vunpack.c.h.b16 %v158
    %v294 = vunpack.c.l.b16 %v159
    %v295 = vunpack.c.h.b16 %v159
    %v296 = vunpack.c.l.b16 %v160
    %v297 = vunpack.c.h.b16 %v160
    %v298 = vunpack.c.l.b16 %v161
    %v299 = vunpack.c.h.b16 %v161
    %v300 = vunpack.c.l.b16 %v162
    %v301 = vunpack.c.h.b16 %v162
    %v302 = vunpack.c.l.b16 %v163
    %v303 = vunpack.c.h.b16 %v163
    %v304 = vunpack.c.l.b16 %v164
    %v305 = vunpack.c.h.b16 %v164
    %v306 = vunpack.c.l.b16 %v165
    %v307 = vunpack.c.h.b16 %v165
    %v308 = vunpack.c.l.b16 %v166
    %v309 = vunpack.c.h.b16 %v166
    %v310 = vunpack.c.l.b16 %v167
    %v311 = vunpack.c.h.b16 %v167
    %v312 = vunpack.c.l.b16 %v168
    %v313 = vunpack.c.h.b16 %v168
    %v314 = vunpack.c.l.b16 %v169
    %v315 = vunpack.c.h.b16 %v169
    %v316 = vunpack.c.l.b16 %v170
    %v317 = vunpack.c.h.b16 %v170
    %v318 = vunpack.c.l.b16 %v171
    %v319 = vunpack.c.h.b16 %v171
    %v320 = vunpack.c.l.b16 %v172
    %v321 = vunpack.c.h.b16 %v172
    %v322 = vunpack.c.l.b16 %v173
    %v323 = vunpack.c.h.b16 %v173
    %v324 = vunpack.c.l.b16 %v174
    %v325 = vunpack.c.h.b16 %v174
    %v326 = vunpack.c.l.b16 %v175
    %v327 = vunpack.c.h.b16 %v175
    %v328 = vunpack.c.l.b16 %v176
    %v329 = vunpack.c.h.b16 %v176
    %v330 = vunpack.c.l.b16 %v177
    %v331 = vunpack.c.h.b16 %v177
    %v332 = vunpack.c.l.b16 %v178
    %v333 = vunpack.c.h.b16 %v178
    %v334 = vunpack.c.l.b16 %v179
    %v335 = vunpack.c.h.b16 %v179
    %v336 = vunpack.c.l.b16 %v180
    %v337 = vunpack.c.h.b16 %v180
    %v338 = vunpack.c.l.b16 %v181
    %v339 = vunpack.c.h.b16 %v181
    %v340 = vunpack.c.l.b16 %v182
    %v341 = vunpack.c.h.b16 %v182
    %v342 = vunpack.c.l.b16 %v183
    %v343 = vunpack.c.h.b16 %v183
    %v344 = vunpack.c.l.b16 %v184
    %v345 = vunpack.c.h.b16 %v184
    %v346 = vunpack.c.l.b16 %v185
    %v347 = vunpack.c.h.b16 %v185
    %v348 = vunpack.c.l.b16 %v186
    %v349 = vunpack.c.h.b16 %v186
    %v350 = vunpack.c.l.b16 %v187
    %v351 = vunpack.c.h.b16 %v187
    %v352 = vunpack.c.l.b16 %v188
    %v353 = vunpack.c.h.b16 %v188
    %v354 = vunpack.c.l.b16 %v189
    %v355 = vunpack.c.h.b16 %v189
    %v356 = vunpack.c.l.b16 %v190
    %v357 = vunpack.c.h.b16 %v190
    %v358 = vunpack.c.l.b16 %v191
    %v359 = vunpack.c.h.b16 %v191
    %v360 = vunpack.c.l.b16 %v192
    %v361 = vunpack.c.h.b16 %v192
    %v362 = vunpack.c.l.b16 %v193
    %v363 = vunpack.c.h.b16 %v193
    %v364 = vunpack.c.l.b16 %v194
    %v365 = vunpack.c.h.b16 %v194
    %v366 = vunpack.c.l.b16 %v195
    %v367 = vunpack.c.h.b16 %v195
    %v368 = vunpack.c.l.b16 %v196
    %v369 = vunpack.c.h.b16 %v196
    %v370 = vunpack.c.l.b16 %v197
    %v371 = vunpack.c.h.b16 %v197
    %v372 = vunpack.c.l.b16 %v198
    %v373 = vunpack.c.h.b16 %v198
    %v374 = vunpack.c.l.b16 %v199
    %v375 = vunpack.c.h.b16 %v199
    %v376 = vunpack.c.l.b16 %v200
    %v377 = vunpack.c.h.b16 %v200
    %v378 = vpack.c.b16 %v288, %v282
    %v379 = vpack.c.b16 %v289, %v283
    %v380 = vpack.c.b16 %v290, %v284
    %v381 = vpack.c.b16 %v291, %v285
    %v382 = vpack.c.b16 %v292, %v286
    %v383 = vpack.c.b16 %v293, %v287
    %v384 = vpack.c.b16 %v300, %v294
    %v385 = vpack.c.b16 %v301, %v295
    %v386 = vpack.c.b16 %v302, %v296
    %v387 = vpack.c.b16 %v303, %v297
    %v388 = vpack.c.b16 %v304, %v298
    %v389 = vpack.c.b16 %v305, %v299
    %v390 = vpack.c.b16 %v312, %v306
    %v391 = vpack.c.b16 %v313, %v307
    %v392 = vpack.c.b16 %v314, %v308
    %v393 = vpack.c.b16 %v315, %v309
    %v394 = vpack.c.b16 %v316, %v310
    %v395 = vpack.c.b16 %v317, %v311
    %v396 = vpack.c.b16 %v324, %v318
    %v397 = vpack.c.b16 %v325, %v319
    %v398 = vpack.c.b16 %v326, %v320
    %v399 = vpack.c.b16 %v327, %v321
    %v400 = vpack.c.b16 %v328, %v322
    %v401 = vpack.c.b16 %v329, %v323
    %v402 = vpack.c.b16 %v336, %v330
    %v403 = vpack.c.b16 %v337, %v331
    %v404 = vpack.c.b16 %v338, %v332
    %v405 = vpack.c.b16 %v339, %v333
    %v406 = vpack.c.b16 %v340, %v334
    %v407 = vpack.c.b16 %v341, %v335
    %v408 = vpack.c.b16 %v348, %v342
    %v409 = vpack.c.b16 %v349, %v343
    %v410 = vpack.c.b16 %v350, %v344
    %v411 = vpack.c.b16 %v351, %v345
    %v412 = vpack.c.b16 %v352, %v346
    %v413 = vpack.c.b16 %v353, %v347
    %v414 = vpack.c.b16 %v360, %v354
    %v415 = vpack.c.b16 %v361, %v355
    %v416 = vpack.c.b16 %v362, %v356
    %v417 = vpack.c.b16 %v363, %v357
    %v418 = vpack.c.b16 %v364, %v358
    %v419 = vpack.c.b16 %v365, %v359
    %v420 = vpack.c.b16 %v372, %v366
    %v421 = vpack.c.b16 %v373, %v367
    %v422 = vpack.c.b16 %v374, %v368
    %v423 = vpack.c.b16 %v375, %v369
    %v424 = vpack.c.b16 %v376, %v370
    %v425 = vpack.c.b16 %v377, %v371
    %474 = vmatprep.subr.bf16.mxu0 %v379
    %475 = vmatpush1.bf16.msra.mxu0 %v378
    %476 = vmatprep.subr.bf16.mxu0 %v385
    %477 = vmatpush1.bf16.msra.mxu0 %v384
    %478 = vmatprep.subr.bf16.mxu0 %v391
    %479 = vmatpush1.bf16.msra.mxu0 %v390
    %480 = vmatprep.subr.bf16.mxu0 %v397
    %481 = vmatpush1.bf16.msra.mxu0 %v396
    %482 = vmatprep.subr.bf16.mxu0 %v403
    %483 = vmatpush1.bf16.msra.mxu0 %v402
    %484 = vmatprep.subr.bf16.mxu0 %v409
    %485 = vmatpush1.bf16.msra.mxu0 %v408
    %486 = vmatprep.subr.bf16.mxu0 %v415
    %487 = vmatpush1.bf16.msra.mxu0 %v414
    %488 = vmatprep.subr.bf16.mxu0 %v421
    %489 = vmatpush1.bf16.msra.mxu0 %v420
    %490 = vmatprep.subr.bf16.mxu0 0
    %491 = vmatpush1.bf16.msra.mxu0 0
    %492 = vmatprep.subr.bf16.mxu0 0
    %493 = vmatpush1.bf16.msra.mxu0 0
    %494 = vmatprep.subr.bf16.mxu0 0
    %495 = vmatpush1.bf16.msra.mxu0 0
    %496 = vmatprep.subr.bf16.mxu0 0
    %497 = vmatpush1.bf16.msra.mxu0 0
    %498 = vmatprep.subr.bf16.mxu0 0
    %499 = vmatpush1.bf16.msra.mxu0 0
    %500 = vmatprep.subr.bf16.mxu0 0
    %501 = vmatpush1.bf16.msra.mxu0 0
    %502 = vmatprep.subr.bf16.mxu0 0
    %503 = vmatpush1.bf16.msra.mxu0 0
    %504 = vmatprep.subr.bf16.mxu0 0
    %505 = vmatpush1.bf16.msra.mxu0 0
    %506 = vmatprep.mubr.bf16.mxu0 0
    %507 = vmatmul.mubr.bf16.gmra.mrb[0].mxu0 %v202
    %v508 = vpop.f32.mrb[0].mxu0
    %v509 = vadd.f32 %v207, %v508
    %v510 = vpop.f32.mrb[0].mxu0
    %v511 = vadd.f32 %v211, %v510
    %v512 = vpop.f32.mrb[0].mxu0
    %v513 = vpop.f32.mrb[0].mxu0
    %514 = vdwg.mxu0
    %515 = vmatprep.subr.bf16.mxu0 %v381
    %516 = vmatpush1.bf16.msra.mxu0 %v380
    %517 = vmatprep.subr.bf16.mxu0 %v387
    %518 = vmatpush1.bf16.msra.mxu0 %v386
    %519 = vmatprep.subr.bf16.mxu0 %v393
    %520 = vmatpush1.bf16.msra.mxu0 %v392
    %521 = vmatprep.subr.bf16.mxu0 %v399
    %522 = vmatpush1.bf16.msra.mxu0 %v398
    %523 = vmatprep.subr.bf16.mxu0 %v405
    %524 = vmatpush1.bf16.msra.mxu0 %v404
    %525 = vmatprep.subr.bf16.mxu0 %v411
    %526 = vmatpush1.bf16.msra.mxu0 %v410
    %527 = vmatprep.subr.bf16.mxu0 %v417
    %528 = vmatpush1.bf16.msra.mxu0 %v416
    %529 = vmatprep.subr.bf16.mxu0 %v423
    %530 = vmatpush1.bf16.msra.mxu0 %v422
    %531 = vmatprep.subr.bf16.mxu0 0
    %532 = vmatpush1.bf16.msra.mxu0 0
    %533 = vmatprep.subr.bf16.mxu0 0
    %534 = vmatpush1.bf16.msra.mxu0 0
    %535 = vmatprep.subr.bf16.mxu0 0
    %536 = vmatpush1.bf16.msra.mxu0 0
    %537 = vmatprep.subr.bf16.mxu0 0
    %538 = vmatpush1.bf16.msra.mxu0 0
    %539 = vmatprep.subr.bf16.mxu0 0
    %540 = vmatpush1.bf16.msra.mxu0 0
    %541 = vmatprep.subr.bf16.mxu0 0
    %542 = vmatpush1.bf16.msra.mxu0 0
    %543 = vmatprep.subr.bf16.mxu0 0
    %544 = vmatpush1.bf16.msra.mxu0 0
    %545 = vmatprep.subr.bf16.mxu0 0
    %546 = vmatpush1.bf16.msra.mxu0 0
    %547 = vmatprep.mubr.bf16.mxu0 0
    %548 = vmatmul.mubr.bf16.gmra.mrb[0].mxu0 %v202
    %v549 = vpop.f32.mrb[0].mxu0
    %v550 = vadd.f32 %v215, %v549
    %v551 = vpop.f32.mrb[0].mxu0
    %v552 = vadd.f32 %v219, %v551
    %v553 = vpop.f32.mrb[0].mxu0
    %v554 = vpop.f32.mrb[0].mxu0
    %555 = vdwg.mxu0
    %556 = vmatprep.subr.bf16.mxu0 %v383
    %557 = vmatpush1.bf16.msra.mxu0 %v382
    %558 = vmatprep.subr.bf16.mxu0 %v389
    %559 = vmatpush1.bf16.msra.mxu0 %v388
    %560 = vmatprep.subr.bf16.mxu0 %v395
    %561 = vmatpush1.bf16.msra.mxu0 %v394
    %562 = vmatprep.subr.bf16.mxu0 %v401
    %563 = vmatpush1.bf16.msra.mxu0 %v400
    %564 = vmatprep.subr.bf16.mxu0 %v407
    %565 = vmatpush1.bf16.msra.mxu0 %v406
    %566 = vmatprep.subr.bf16.mxu0 %v413
    %567 = vmatpush1.bf16.msra.mxu0 %v412
    %568 = vmatprep.subr.bf16.mxu0 %v419
    %569 = vmatpush1.bf16.msra.mxu0 %v418
    %570 = vmatprep.subr.bf16.mxu0 %v425
    %571 = vmatpush1.bf16.msra.mxu0 %v424
    %572 = vmatprep.subr.bf16.mxu0 0
    %573 = vmatpush1.bf16.msra.mxu0 0
    %574 = vmatprep.subr.bf16.mxu0 0
    %575 = vmatpush1.bf16.msra.mxu0 0
    %576 = vmatprep.subr.bf16.mxu0 0
    %577 = vmatpush1.bf16.msra.mxu0 0
    %578 = vmatprep.subr.bf16.mxu0 0
    %579 = vmatpush1.bf16.msra.mxu0 0
    %580 = vmatprep.subr.bf16.mxu0 0
    %581 = vmatpush1.bf16.msra.mxu0 0
    %582 = vmatprep.subr.bf16.mxu0 0
    %583 = vmatpush1.bf16.msra.mxu0 0
    %584 = vmatprep.subr.bf16.mxu0 0
    %585 = vmatpush1.bf16.msra.mxu0 0
    %586 = vmatprep.subr.bf16.mxu0 0
    %587 = vmatpush1.bf16.msra.mxu0 0
    %588 = vmatprep.mubr.bf16.mxu0 0
    %589 = vmatmul.mubr.bf16.gmra.mrb[0].mxu0 %v202
    %v590 = vpop.f32.mrb[0].mxu0
    %v591 = vadd.f32 %v223, %v590
    %v592 = vpop.f32.mrb[0].mxu0
    %v593 = vadd.f32 %v227, %v592
    %v594 = vpop.f32.mrb[0].mxu0
    %v595 = vpop.f32.mrb[0].mxu0
    %596 = vdwg.mxu0
    %v597 = vtanh.pop %v509
    %v598 = vtanh.pop %v511
    %v599 = vtanh.pop %v550
    %v600 = vtanh.pop %v552
    %v601 = vtanh.pop %v591
    %v602 = vtanh.pop %v593
    %v603 = vld [vmem:[#allocation4] sm:$0xff]
    %v604 = vld [vmem:[#allocation4 + $0x8] sm:$0xff]
    %v605 = vld [vmem:[#allocation4 + $0x10] sm:$0xff]
    %v606 = vld [vmem:[#allocation4 + $0x18] sm:$0xff]
    %v607 = vld [vmem:[#allocation4 + $0x20] sm:$0xff]
    %v608 = vld [vmem:[#allocation4 + $0x28] sm:$0xff]
    %v609 = vld [vmem:[#allocation4 + $0x30] sm:$0xff]
    %v610 = vld [vmem:[#allocation4 + $0x38] sm:$0xff]
    %v611 = vld [vmem:[#allocation4 + $0x40] sm:$0xff]
    %v612 = vld [vmem:[#allocation4 + $0x48] sm:$0xff]
    %v613 = vld [vmem:[#allocation4 + $0x50] sm:$0xff]
    %v614 = vld [vmem:[#allocation4 + $0x58] sm:$0xff]
    %v615 = vld [vmem:[#allocation4 + $0x60] sm:$0xff]
    %v616 = vld [vmem:[#allocation4 + $0x68] sm:$0xff]
    %v617 = vld [vmem:[#allocation4 + $0x70] sm:$0xff]
    %v618 = vld [vmem:[#allocation4 + $0x78] sm:$0xff]
    %v619 = vld [vmem:[#allocation4 + $0x80] sm:$0xff]
    %v620 = vld [vmem:[#allocation4 + $0x88] sm:$0xff]
    %v621 = vld [vmem:[#allocation4 + $0x90] sm:$0xff]
    %v622 = vld [vmem:[#allocation4 + $0x98] sm:$0xff]
    %v623 = vld [vmem:[#allocation4 + $0xa0] sm:$0xff]
    %v624 = vld [vmem:[#allocation4 + $0xa8] sm:$0xff]
    %v625 = vld [vmem:[#allocation4 + $0xb0] sm:$0xff]
    %v626 = vld [vmem:[#allocation4 + $0xb8] sm:$0xff]
    %v627 = vld [vmem:[#allocation4 + $0xc0] sm:$0xff]
    %v628 = vld [vmem:[#allocation4 + $0xc8] sm:$0xff]
    %v629 = vld [vmem:[#allocation4 + $0xd0] sm:$0xff]
    %v630 = vld [vmem:[#allocation4 + $0xd8] sm:$0xff]
    %v631 = vld [vmem:[#allocation4 + $0xe0] sm:$0xff]
    %v632 = vld [vmem:[#allocation4 + $0xe8] sm:$0xff]
    %v633 = vld [vmem:[#allocation4 + $0xf0] sm:$0xff]
    %v634 = vld [vmem:[#allocation4 + $0xf8] sm:$0xff]
    %v635 = vld [vmem:[#allocation4 + $0x100] sm:$0xff]
    %v636 = vld [vmem:[#allocation4 + $0x108] sm:$0xff]
    %v637 = vld [vmem:[#allocation4 + $0x110] sm:$0xff]
    %v638 = vld [vmem:[#allocation4 + $0x118] sm:$0xff]
    %v639 = vld [vmem:[#allocation4 + $0x120] sm:$0xff]
    %v640 = vld [vmem:[#allocation4 + $0x128] sm:$0xff]
    %v641 = vld [vmem:[#allocation4 + $0x130] sm:$0xff]
    %v642 = vld [vmem:[#allocation4 + $0x138] sm:$0xff]
    %v643 = vld [vmem:[#allocation4 + $0x140] sm:$0xff]
    %v644 = vld [vmem:[#allocation4 + $0x148] sm:$0xff]
    %v645 = vld [vmem:[#allocation4 + $0x150] sm:$0xff]
    %v646 = vld [vmem:[#allocation4 + $0x158] sm:$0xff]
    %v647 = vld [vmem:[#allocation4 + $0x160] sm:$0xff]
    %v648 = vld [vmem:[#allocation4 + $0x168] sm:$0xff]
    %v649 = vld [vmem:[#allocation4 + $0x170] sm:$0xff]
    %v650 = vld [vmem:[#allocation4 + $0x178] sm:$0xff]
    %v651 = vld [vmem:[#allocation4 + $0x180] sm:$0xff]
    %v652 = vld [vmem:[#allocation4 + $0x188] sm:$0xff]
    %v653 = vld [vmem:[#allocation4 + $0x190] sm:$0xff]
    %v654 = vld [vmem:[#allocation4 + $0x198] sm:$0xff]
    %v655 = vld [vmem:[#allocation4 + $0x1a0] sm:$0xff]
    %v656 = vld [vmem:[#allocation4 + $0x1a8] sm:$0xff]
    %v657 = vld [vmem:[#allocation4 + $0x1b0] sm:$0xff]
    %v658 = vld [vmem:[#allocation4 + $0x1b8] sm:$0xff]
    %v659 = vld [vmem:[#allocation4 + $0x1c0] sm:$0xff]
    %v660 = vld [vmem:[#allocation4 + $0x1c8] sm:$0xff]
    %v661 = vld [vmem:[#allocation4 + $0x1d0] sm:$0xff]
    %v662 = vld [vmem:[#allocation4 + $0x1d8] sm:$0xff]
    %v663 = vld [vmem:[#allocation4 + $0x1e0] sm:$0xff]
    %v664 = vld [vmem:[#allocation4 + $0x1e8] sm:$0xff]
    %v665 = vld [vmem:[#allocation4 + $0x1f0] sm:$0xff]
    %v666 = vld [vmem:[#allocation4 + $0x1f8] sm:$0xff]
    %v667 = vld [vmem:[#allocation4 + $0x200] sm:$0xff]
    %v668 = vld [vmem:[#allocation4 + $0x208] sm:$0xff]
    %v669 = vld [vmem:[#allocation4 + $0x210] sm:$0xff]
    %v670 = vld [vmem:[#allocation4 + $0x218] sm:$0xff]
    %v671 = vld [vmem:[#allocation4 + $0x220] sm:$0xff]
    %v672 = vld [vmem:[#allocation4 + $0x228] sm:$0xff]
    %v673 = vld [vmem:[#allocation4 + $0x230] sm:$0xff]
    %v674 = vld [vmem:[#allocation4 + $0x238] sm:$0xff]
    %v675 = vld [vmem:[#allocation4 + $0x240] sm:$0xff]
    %v676 = vld [vmem:[#allocation4 + $0x248] sm:$0xff]
    %v677 = vld [vmem:[#allocation4 + $0x250] sm:$0xff]
    %v678 = vld [vmem:[#allocation4 + $0x258] sm:$0xff]
    %v679 = vld [vmem:[#allocation4 + $0x260] sm:$0xff]
    %v680 = vld [vmem:[#allocation4 + $0x268] sm:$0xff]
    %v681 = vld [vmem:[#allocation4 + $0x270] sm:$0xff]
    %v682 = vld [vmem:[#allocation4 + $0x278] sm:$0xff]
    %v683 = vld [vmem:[#allocation4 + $0x280] sm:$0xff]
    %v684 = vld [vmem:[#allocation4 + $0x288] sm:$0xff]
    %v685 = vld [vmem:[#allocation4 + $0x290] sm:$0xff]
    %v686 = vld [vmem:[#allocation4 + $0x298] sm:$0xff]
    %v687 = vld [vmem:[#allocation4 + $0x2a0] sm:$0xff]
    %v688 = vld [vmem:[#allocation4 + $0x2a8] sm:$0xff]
    %v689 = vld [vmem:[#allocation4 + $0x2b0] sm:$0xff]
    %v690 = vld [vmem:[#allocation4 + $0x2b8] sm:$0xff]
    %v691 = vld [vmem:[#allocation4 + $0x2c0] sm:$0xff]
    %v692 = vld [vmem:[#allocation4 + $0x2c8] sm:$0xff]
    %v693 = vld [vmem:[#allocation4 + $0x2d0] sm:$0xff]
    %v694 = vld [vmem:[#allocation4 + $0x2d8] sm:$0xff]
    %v695 = vld [vmem:[#allocation4 + $0x2e0] sm:$0xff]
    %v696 = vld [vmem:[#allocation4 + $0x2e8] sm:$0xff]
    %v697 = vld [vmem:[#allocation4 + $0x2f0] sm:$0xff]
    %v698 = vld [vmem:[#allocation4 + $0x2f8] sm:$0xff]
    %v699 = vld [vmem:[#allocation4 + $0x300] sm:$0xff]
    %v700 = vld [vmem:[#allocation4 + $0x308] sm:$0xff]
    %v701 = vld [vmem:[#allocation4 + $0x310] sm:$0xff]
    %v702 = vld [vmem:[#allocation4 + $0x318] sm:$0xff]
    %v703 = vld [vmem:[#allocation4 + $0x320] sm:$0xff]
    %v704 = vld [vmem:[#allocation4 + $0x328] sm:$0xff]
    %v705 = vld [vmem:[#allocation4 + $0x330] sm:$0xff]
    %v706 = vld [vmem:[#allocation4 + $0x338] sm:$0xff]
    %v707 = vld [vmem:[#allocation4 + $0x340] sm:$0xff]
    %v708 = vld [vmem:[#allocation4 + $0x348] sm:$0xff]
    %v709 = vld [vmem:[#allocation4 + $0x350] sm:$0xff]
    %v710 = vld [vmem:[#allocation4 + $0x358] sm:$0xff]
    %v711 = vld [vmem:[#allocation4 + $0x360] sm:$0xff]
    %v712 = vld [vmem:[#allocation4 + $0x368] sm:$0xff]
    %v713 = vld [vmem:[#allocation4 + $0x370] sm:$0xff]
    %v714 = vld [vmem:[#allocation4 + $0x378] sm:$0xff]
    %v715 = vld [vmem:[#allocation4 + $0x380] sm:$0xff]
    %v716 = vld [vmem:[#allocation4 + $0x388] sm:$0xff]
    %v717 = vld [vmem:[#allocation4 + $0x390] sm:$0xff]
    %v718 = vld [vmem:[#allocation4 + $0x398] sm:$0xff]
    %v719 = vld [vmem:[#allocation4 + $0x3a0] sm:$0xff]
    %v720 = vld [vmem:[#allocation4 + $0x3a8] sm:$0xff]
    %v721 = vld [vmem:[#allocation4 + $0x3b0] sm:$0xff]
    %v722 = vld [vmem:[#allocation4 + $0x3b8] sm:$0xff]
    %v723 = vld [vmem:[#allocation4 + $0x3c0] sm:$0xff]
    %v724 = vld [vmem:[#allocation4 + $0x3c8] sm:$0xff]
    %v725 = vld [vmem:[#allocation4 + $0x3d0] sm:$0xff]
    %v726 = vld [vmem:[#allocation4 + $0x3d8] sm:$0xff]
    %v727 = vld [vmem:[#allocation4 + $0x3e0] sm:$0xff]
    %v728 = vld [vmem:[#allocation4 + $0x3e8] sm:$0xff]
    %v729 = vld [vmem:[#allocation4 + $0x3f0] sm:$0xff]
    %v730 = vld [vmem:[#allocation4 + $0x3f8] sm:$0xff]
    %v731 = vld [vmem:[#allocation4 + $0x400] sm:$0xff]
    %v732 = vld [vmem:[#allocation4 + $0x408] sm:$0xff]
    %v733 = vld [vmem:[#allocation4 + $0x410] sm:$0xff]
    %v734 = vld [vmem:[#allocation4 + $0x418] sm:$0xff]
    %v735 = vld [vmem:[#allocation4 + $0x420] sm:$0xff]
    %v736 = vld [vmem:[#allocation4 + $0x428] sm:$0xff]
    %v737 = vld [vmem:[#allocation4 + $0x430] sm:$0xff]
    %v738 = vld [vmem:[#allocation4 + $0x438] sm:$0xff]
    %v739 = vld [vmem:[#allocation4 + $0x440] sm:$0xff]
    %v740 = vld [vmem:[#allocation4 + $0x448] sm:$0xff]
    %v741 = vld [vmem:[#allocation4 + $0x450] sm:$0xff]
    %v742 = vld [vmem:[#allocation4 + $0x458] sm:$0xff]
    %v743 = vld [vmem:[#allocation4 + $0x460] sm:$0xff]
    %v744 = vld [vmem:[#allocation4 + $0x468] sm:$0xff]
    %v745 = vld [vmem:[#allocation4 + $0x470] sm:$0xff]
    %v746 = vld [vmem:[#allocation4 + $0x478] sm:$0xff]
    %v747 = vld [vmem:[#allocation4 + $0x480] sm:$0xff]
    %v748 = vld [vmem:[#allocation4 + $0x488] sm:$0xff]
    %v749 = vld [vmem:[#allocation4 + $0x490] sm:$0xff]
    %v750 = vld [vmem:[#allocation4 + $0x498] sm:$0xff]
    %v751 = vld [vmem:[#allocation4 + $0x4a0] sm:$0xff]
    %v752 = vld [vmem:[#allocation4 + $0x4a8] sm:$0xff]
    %v753 = vld [vmem:[#allocation4 + $0x4b0] sm:$0xff]
    %v754 = vld [vmem:[#allocation4 + $0x4b8] sm:$0xff]
    %v755 = vld [vmem:[#allocation4 + $0x4c0] sm:$0xff]
    %v756 = vld [vmem:[#allocation4 + $0x4c8] sm:$0xff]
    %v757 = vld [vmem:[#allocation4 + $0x4d0] sm:$0xff]
    %v758 = vld [vmem:[#allocation4 + $0x4d8] sm:$0xff]
    %v759 = vld [vmem:[#allocation4 + $0x4e0] sm:$0xff]
    %v760 = vld [vmem:[#allocation4 + $0x4e8] sm:$0xff]
    %v761 = vld [vmem:[#allocation4 + $0x4f0] sm:$0xff]
    %v762 = vld [vmem:[#allocation4 + $0x4f8] sm:$0xff]
    %v763 = vld [vmem:[#allocation4 + $0x500] sm:$0xff]
    %v764 = vld [vmem:[#allocation4 + $0x508] sm:$0xff]
    %v765 = vld [vmem:[#allocation4 + $0x510] sm:$0xff]
    %v766 = vld [vmem:[#allocation4 + $0x518] sm:$0xff]
    %v767 = vld [vmem:[#allocation4 + $0x520] sm:$0xff]
    %v768 = vld [vmem:[#allocation4 + $0x528] sm:$0xff]
    %v769 = vld [vmem:[#allocation4 + $0x530] sm:$0xff]
    %v770 = vld [vmem:[#allocation4 + $0x538] sm:$0xff]
    %v771 = vld [vmem:[#allocation4 + $0x540] sm:$0xff]
    %v772 = vld [vmem:[#allocation4 + $0x548] sm:$0xff]
    %v773 = vld [vmem:[#allocation4 + $0x550] sm:$0xff]
    %v774 = vld [vmem:[#allocation4 + $0x558] sm:$0xff]
    %v775 = vld [vmem:[#allocation4 + $0x560] sm:$0xff]
    %v776 = vld [vmem:[#allocation4 + $0x568] sm:$0xff]
    %v777 = vld [vmem:[#allocation4 + $0x570] sm:$0xff]
    %v778 = vld [vmem:[#allocation4 + $0x578] sm:$0xff]
    %v779 = vld [vmem:[#allocation4 + $0x580] sm:$0xff]
    %v780 = vld [vmem:[#allocation4 + $0x588] sm:$0xff]
    %v781 = vld [vmem:[#allocation4 + $0x590] sm:$0xff]
    %v782 = vld [vmem:[#allocation4 + $0x598] sm:$0xff]
    %v783 = vld [vmem:[#allocation4 + $0x5a0] sm:$0xff]
    %v784 = vld [vmem:[#allocation4 + $0x5a8] sm:$0xff]
    %v785 = vld [vmem:[#allocation4 + $0x5b0] sm:$0xff]
    %v786 = vld [vmem:[#allocation4 + $0x5b8] sm:$0xff]
    %v787 = vld [vmem:[#allocation4 + $0x5c0] sm:$0xff]
    %v788 = vld [vmem:[#allocation4 + $0x5c8] sm:$0xff]
    %v789 = vld [vmem:[#allocation4 + $0x5d0] sm:$0xff]
    %v790 = vld [vmem:[#allocation4 + $0x5d8] sm:$0xff]
    %v791 = vld [vmem:[#allocation4 + $0x5e0] sm:$0xff]
    %v792 = vld [vmem:[#allocation4 + $0x5e8] sm:$0xff]
    %v793 = vld [vmem:[#allocation4 + $0x5f0] sm:$0xff]
    %v794 = vld [vmem:[#allocation4 + $0x5f8] sm:$0xff]
    %v795 = vld [vmem:[%s4] sm:$0xf]
    %v796 = vpack.c.bf16 %v597, %v597
    %v797 = vpack.c.bf16 %v598, %v598
    %v798 = vpack.c.bf16 %v599, %v599
    %v799 = vpack.c.bf16 %v600, %v600
    %v800 = vpack.c.bf16 %v601, %v601
    %v801 = vpack.c.bf16 %v602, %v602
    %v803 = vlaneseq
    %v804 = vshrl.u32 %v803, 7
    %v805 = vsub.s32 0, %v804
    %v806 = vrot.slane %v795, %v805
    %v807 = vlaneseq
    %v808 = vshrl.u32 %v807, 7
    %v809 = vsub.s32 1, %v808
    %v810 = vrot.slane %v795, %v809
    %v811 = vlaneseq
    %v812 = vshrl.u32 %v811, 7
    %v813 = vsub.s32 2, %v812
    %v814 = vrot.slane %v795, %v813
    %v815 = vlaneseq
    %v816 = vshrl.u32 %v815, 7
    %v817 = vsub.s32 3, %v816
    %v818 = vrot.slane %v795, %v817
    %v1015 = vunpack.c.l.b16 %v603
    %v1016 = vunpack.c.h.b16 %v603
    %v1017 = vunpack.c.l.b16 %v604
    %v1018 = vunpack.c.h.b16 %v604
    %v1019 = vunpack.c.l.b16 %v605
    %v1020 = vunpack.c.h.b16 %v605
    %v1021 = vunpack.c.l.b16 %v606
    %v1022 = vunpack.c.h.b16 %v606
    %v1023 = vunpack.c.l.b16 %v607
    %v1024 = vunpack.c.h.b16 %v607
    %v1025 = vunpack.c.l.b16 %v608
    %v1026 = vunpack.c.h.b16 %v608
    %v1027 = vunpack.c.l.b16 %v609
    %v1028 = vunpack.c.h.b16 %v609
    %v1029 = vunpack.c.l.b16 %v610
    %v1030 = vunpack.c.h.b16 %v610
    %v1031 = vunpack.c.l.b16 %v611
    %v1032 = vunpack.c.h.b16 %v611
    %v1033 = vunpack.c.l.b16 %v612
    %v1034 = vunpack.c.h.b16 %v612
    %v1035 = vunpack.c.l.b16 %v613
    %v1036 = vunpack.c.h.b16 %v613
    %v1037 = vunpack.c.l.b16 %v614
    %v1038 = vunpack.c.h.b16 %v614
    %v1039 = vunpack.c.l.b16 %v615
    %v1040 = vunpack.c.h.b16 %v615
    %v1041 = vunpack.c.l.b16 %v616
    %v1042 = vunpack.c.h.b16 %v616
    %v1043 = vunpack.c.l.b16 %v617
    %v1044 = vunpack.c.h.b16 %v617
    %v1045 = vunpack.c.l.b16 %v618
    %v1046 = vunpack.c.h.b16 %v618
    %v1047 = vunpack.c.l.b16 %v619
    %v1048 = vunpack.c.h.b16 %v619
    %v1049 = vunpack.c.l.b16 %v620
    %v1050 = vunpack.c.h.b16 %v620
    %v1051 = vunpack.c.l.b16 %v621
    %v1052 = vunpack.c.h.b16 %v621
    %v1053 = vunpack.c.l.b16 %v622
    %v1054 = vunpack.c.h.b16 %v622
    %v1055 = vunpack.c.l.b16 %v623
    %v1056 = vunpack.c.h.b16 %v623
    %v1057 = vunpack.c.l.b16 %v624
    %v1058 = vunpack.c.h.b16 %v624
    %v1059 = vunpack.c.l.b16 %v625
    %v1060 = vunpack.c.h.b16 %v625
    %v1061 = vunpack.c.l.b16 %v626
    %v1062 = vunpack.c.h.b16 %v626
    %v1063 = vunpack.c.l.b16 %v627
    %v1064 = vunpack.c.h.b16 %v627
    %v1065 = vunpack.c.l.b16 %v628
    %v1066 = vunpack.c.h.b16 %v628
    %v1067 = vunpack.c.l.b16 %v629
    %v1068 = vunpack.c.h.b16 %v629
    %v1069 = vunpack.c.l.b16 %v630
    %v1070 = vunpack.c.h.b16 %v630
    %v1071 = vunpack.c.l.b16 %v631
    %v1072 = vunpack.c.h.b16 %v631
    %v1073 = vunpack.c.l.b16 %v632
    %v1074 = vunpack.c.h.b16 %v632
    %v1075 = vunpack.c.l.b16 %v633
    %v1076 = vunpack.c.h.b16 %v633
    %v1077 = vunpack.c.l.b16 %v634
    %v1078 = vunpack.c.h.b16 %v634
    %v1079 = vunpack.c.l.b16 %v635
    %v1080 = vunpack.c.h.b16 %v635
    %v1081 = vunpack.c.l.b16 %v636
    %v1082 = vunpack.c.h.b16 %v636
    %v1083 = vunpack.c.l.b16 %v637
    %v1084 = vunpack.c.h.b16 %v637
    %v1085 = vunpack.c.l.b16 %v638
    %v1086 = vunpack.c.h.b16 %v638
    %v1087 = vunpack.c.l.b16 %v639
    %v1088 = vunpack.c.h.b16 %v639
    %v1089 = vunpack.c.l.b16 %v640
    %v1090 = vunpack.c.h.b16 %v640
    %v1091 = vunpack.c.l.b16 %v641
    %v1092 = vunpack.c.h.b16 %v641
    %v1093 = vunpack.c.l.b16 %v642
    %v1094 = vunpack.c.h.b16 %v642
    %v1095 = vunpack.c.l.b16 %v643
    %v1096 = vunpack.c.h.b16 %v643
    %v1097 = vunpack.c.l.b16 %v644
    %v1098 = vunpack.c.h.b16 %v644
    %v1099 = vunpack.c.l.b16 %v645
    %v1100 = vunpack.c.h.b16 %v645
    %v1101 = vunpack.c.l.b16 %v646
    %v1102 = vunpack.c.h.b16 %v646
    %v1103 = vunpack.c.l.b16 %v647
    %v1104 = vunpack.c.h.b16 %v647
    %v1105 = vunpack.c.l.b16 %v648
    %v1106 = vunpack.c.h.b16 %v648
    %v1107 = vunpack.c.l.b16 %v649
    %v1108 = vunpack.c.h.b16 %v649
    %v1109 = vunpack.c.l.b16 %v650
    %v1110 = vunpack.c.h.b16 %v650
    %v1111 = vunpack.c.l.b16 %v651
    %v1112 = vunpack.c.h.b16 %v651
    %v1113 = vunpack.c.l.b16 %v652
    %v1114 = vunpack.c.h.b16 %v652
    %v1115 = vunpack.c.l.b16 %v653
    %v1116 = vunpack.c.h.b16 %v653
    %v1117 = vunpack.c.l.b16 %v654
    %v1118 = vunpack.c.h.b16 %v654
    %v1119 = vunpack.c.l.b16 %v655
    %v1120 = vunpack.c.h.b16 %v655
    %v1121 = vunpack.c.l.b16 %v656
    %v1122 = vunpack.c.h.b16 %v656
    %v1123 = vunpack.c.l.b16 %v657
    %v1124 = vunpack.c.h.b16 %v657
    %v1125 = vunpack.c.l.b16 %v658
    %v1126 = vunpack.c.h.b16 %v658
    %v1127 = vunpack.c.l.b16 %v659
    %v1128 = vunpack.c.h.b16 %v659
    %v1129 = vunpack.c.l.b16 %v660
    %v1130 = vunpack.c.h.b16 %v660
    %v1131 = vunpack.c.l.b16 %v661
    %v1132 = vunpack.c.h.b16 %v661
    %v1133 = vunpack.c.l.b16 %v662
    %v1134 = vunpack.c.h.b16 %v662
    %v1135 = vunpack.c.l.b16 %v663
    %v1136 = vunpack.c.h.b16 %v663
    %v1137 = vunpack.c.l.b16 %v664
    %v1138 = vunpack.c.h.b16 %v664
    %v1139 = vunpack.c.l.b16 %v665
    %v1140 = vunpack.c.h.b16 %v665
    %v1141 = vunpack.c.l.b16 %v666
    %v1142 = vunpack.c.h.b16 %v666
    %v1143 = vunpack.c.l.b16 %v667
    %v1144 = vunpack.c.h.b16 %v667
    %v1145 = vunpack.c.l.b16 %v668
    %v1146 = vunpack.c.h.b16 %v668
    %v1147 = vunpack.c.l.b16 %v669
    %v1148 = vunpack.c.h.b16 %v669
    %v1149 = vunpack.c.l.b16 %v670
    %v1150 = vunpack.c.h.b16 %v670
    %v1151 = vunpack.c.l.b16 %v671
    %v1152 = vunpack.c.h.b16 %v671
    %v1153 = vunpack.c.l.b16 %v672
    %v1154 = vunpack.c.h.b16 %v672
    %v1155 = vunpack.c.l.b16 %v673
    %v1156 = vunpack.c.h.b16 %v673
    %v1157 = vunpack.c.l.b16 %v674
    %v1158 = vunpack.c.h.b16 %v674
    %v1159 = vunpack.c.l.b16 %v675
    %v1160 = vunpack.c.h.b16 %v675
    %v1161 = vunpack.c.l.b16 %v676
    %v1162 = vunpack.c.h.b16 %v676
    %v1163 = vunpack.c.l.b16 %v677
    %v1164 = vunpack.c.h.b16 %v677
    %v1165 = vunpack.c.l.b16 %v678
    %v1166 = vunpack.c.h.b16 %v678
    %v1167 = vunpack.c.l.b16 %v679
    %v1168 = vunpack.c.h.b16 %v679
    %v1169 = vunpack.c.l.b16 %v680
    %v1170 = vunpack.c.h.b16 %v680
    %v1171 = vunpack.c.l.b16 %v681
    %v1172 = vunpack.c.h.b16 %v681
    %v1173 = vunpack.c.l.b16 %v682
    %v1174 = vunpack.c.h.b16 %v682
    %v1175 = vunpack.c.l.b16 %v683
    %v1176 = vunpack.c.h.b16 %v683
    %v1177 = vunpack.c.l.b16 %v684
    %v1178 = vunpack.c.h.b16 %v684
    %v1179 = vunpack.c.l.b16 %v685
    %v1180 = vunpack.c.h.b16 %v685
    %v1181 = vunpack.c.l.b16 %v686
    %v1182 = vunpack.c.h.b16 %v686
    %v1183 = vunpack.c.l.b16 %v687
    %v1184 = vunpack.c.h.b16 %v687
    %v1185 = vunpack.c.l.b16 %v688
    %v1186 = vunpack.c.h.b16 %v688
    %v1187 = vunpack.c.l.b16 %v689
    %v1188 = vunpack.c.h.b16 %v689
    %v1189 = vunpack.c.l.b16 %v690
    %v1190 = vunpack.c.h.b16 %v690
    %v1191 = vunpack.c.l.b16 %v691
    %v1192 = vunpack.c.h.b16 %v691
    %v1193 = vunpack.c.l.b16 %v692
    %v1194 = vunpack.c.h.b16 %v692
    %v1195 = vunpack.c.l.b16 %v693
    %v1196 = vunpack.c.h.b16 %v693
    %v1197 = vunpack.c.l.b16 %v694
    %v1198 = vunpack.c.h.b16 %v694
    %v1199 = vunpack.c.l.b16 %v695
    %v1200 = vunpack.c.h.b16 %v695
    %v1201 = vunpack.c.l.b16 %v696
    %v1202 = vunpack.c.h.b16 %v696
    %v1203 = vunpack.c.l.b16 %v697
    %v1204 = vunpack.c.h.b16 %v697
    %v1205 = vunpack.c.l.b16 %v698
    %v1206 = vunpack.c.h.b16 %v698
    %v1207 = vunpack.c.l.b16 %v699
    %v1208 = vunpack.c.h.b16 %v699
    %v1209 = vunpack.c.l.b16 %v700
    %v1210 = vunpack.c.h.b16 %v700
    %v1211 = vunpack.c.l.b16 %v701
    %v1212 = vunpack.c.h.b16 %v701
    %v1213 = vunpack.c.l.b16 %v702
    %v1214 = vunpack.c.h.b16 %v702
    %v1215 = vunpack.c.l.b16 %v703
    %v1216 = vunpack.c.h.b16 %v703
    %v1217 = vunpack.c.l.b16 %v704
    %v1218 = vunpack.c.h.b16 %v704
    %v1219 = vunpack.c.l.b16 %v705
    %v1220 = vunpack.c.h.b16 %v705
    %v1221 = vunpack.c.l.b16 %v706
    %v1222 = vunpack.c.h.b16 %v706
    %v1223 = vunpack.c.l.b16 %v707
    %v1224 = vunpack.c.h.b16 %v707
    %v1225 = vunpack.c.l.b16 %v708
    %v1226 = vunpack.c.h.b16 %v708
    %v1227 = vunpack.c.l.b16 %v709
    %v1228 = vunpack.c.h.b16 %v709
    %v1229 = vunpack.c.l.b16 %v710
    %v1230 = vunpack.c.h.b16 %v710
    %v1231 = vunpack.c.l.b16 %v711
    %v1232 = vunpack.c.h.b16 %v711
    %v1233 = vunpack.c.l.b16 %v712
    %v1234 = vunpack.c.h.b16 %v712
    %v1235 = vunpack.c.l.b16 %v713
    %v1236 = vunpack.c.h.b16 %v713
    %v1237 = vunpack.c.l.b16 %v714
    %v1238 = vunpack.c.h.b16 %v714
    %v1239 = vunpack.c.l.b16 %v715
    %v1240 = vunpack.c.h.b16 %v715
    %v1241 = vunpack.c.l.b16 %v716
    %v1242 = vunpack.c.h.b16 %v716
    %v1243 = vunpack.c.l.b16 %v717
    %v1244 = vunpack.c.h.b16 %v717
    %v1245 = vunpack.c.l.b16 %v718
    %v1246 = vunpack.c.h.b16 %v718
    %v1247 = vunpack.c.l.b16 %v719
    %v1248 = vunpack.c.h.b16 %v719
    %v1249 = vunpack.c.l.b16 %v720
    %v1250 = vunpack.c.h.b16 %v720
    %v1251 = vunpack.c.l.b16 %v721
    %v1252 = vunpack.c.h.b16 %v721
    %v1253 = vunpack.c.l.b16 %v722
    %v1254 = vunpack.c.h.b16 %v722
    %v1255 = vunpack.c.l.b16 %v723
    %v1256 = vunpack.c.h.b16 %v723
    %v1257 = vunpack.c.l.b16 %v724
    %v1258 = vunpack.c.h.b16 %v724
    %v1259 = vunpack.c.l.b16 %v725
    %v1260 = vunpack.c.h.b16 %v725
    %v1261 = vunpack.c.l.b16 %v726
    %v1262 = vunpack.c.h.b16 %v726
    %v1263 = vunpack.c.l.b16 %v727
    %v1264 = vunpack.c.h.b16 %v727
    %v1265 = vunpack.c.l.b16 %v728
    %v1266 = vunpack.c.h.b16 %v728
    %v1267 = vunpack.c.l.b16 %v729
    %v1268 = vunpack.c.h.b16 %v729
    %v1269 = vunpack.c.l.b16 %v730
    %v1270 = vunpack.c.h.b16 %v730
    %v1271 = vunpack.c.l.b16 %v731
    %v1272 = vunpack.c.h.b16 %v731
    %v1273 = vunpack.c.l.b16 %v732
    %v1274 = vunpack.c.h.b16 %v732
    %v1275 = vunpack.c.l.b16 %v733
    %v1276 = vunpack.c.h.b16 %v733
    %v1277 = vunpack.c.l.b16 %v734
    %v1278 = vunpack.c.h.b16 %v734
    %v1279 = vunpack.c.l.b16 %v735
    %v1280 = vunpack.c.h.b16 %v735
    %v1281 = vunpack.c.l.b16 %v736
    %v1282 = vunpack.c.h.b16 %v736
    %v1283 = vunpack.c.l.b16 %v737
    %v1284 = vunpack.c.h.b16 %v737
    %v1285 = vunpack.c.l.b16 %v738
    %v1286 = vunpack.c.h.b16 %v738
    %v1287 = vunpack.c.l.b16 %v739
    %v1288 = vunpack.c.h.b16 %v739
    %v1289 = vunpack.c.l.b16 %v740
    %v1290 = vunpack.c.h.b16 %v740
    %v1291 = vunpack.c.l.b16 %v741
    %v1292 = vunpack.c.h.b16 %v741
    %v1293 = vunpack.c.l.b16 %v742
    %v1294 = vunpack.c.h.b16 %v742
    %v1295 = vunpack.c.l.b16 %v743
    %v1296 = vunpack.c.h.b16 %v743
    %v1297 = vunpack.c.l.b16 %v744
    %v1298 = vunpack.c.h.b16 %v744
    %v1299 = vunpack.c.l.b16 %v745
    %v1300 = vunpack.c.h.b16 %v745
    %v1301 = vunpack.c.l.b16 %v746
    %v1302 = vunpack.c.h.b16 %v746
    %v1303 = vunpack.c.l.b16 %v747
    %v1304 = vunpack.c.h.b16 %v747
    %v1305 = vunpack.c.l.b16 %v748
    %v1306 = vunpack.c.h.b16 %v748
    %v1307 = vunpack.c.l.b16 %v749
    %v1308 = vunpack.c.h.b16 %v749
    %v1309 = vunpack.c.l.b16 %v750
    %v1310 = vunpack.c.h.b16 %v750
    %v1311 = vunpack.c.l.b16 %v751
    %v1312 = vunpack.c.h.b16 %v751
    %v1313 = vunpack.c.l.b16 %v752
    %v1314 = vunpack.c.h.b16 %v752
    %v1315 = vunpack.c.l.b16 %v753
    %v1316 = vunpack.c.h.b16 %v753
    %v1317 = vunpack.c.l.b16 %v754
    %v1318 = vunpack.c.h.b16 %v754
    %v1319 = vunpack.c.l.b16 %v755
    %v1320 = vunpack.c.h.b16 %v755
    %v1321 = vunpack.c.l.b16 %v756
    %v1322 = vunpack.c.h.b16 %v756
    %v1323 = vunpack.c.l.b16 %v757
    %v1324 = vunpack.c.h.b16 %v757
    %v1325 = vunpack.c.l.b16 %v758
    %v1326 = vunpack.c.h.b16 %v758
    %v1327 = vunpack.c.l.b16 %v759
    %v1328 = vunpack.c.h.b16 %v759
    %v1329 = vunpack.c.l.b16 %v760
    %v1330 = vunpack.c.h.b16 %v760
    %v1331 = vunpack.c.l.b16 %v761
    %v1332 = vunpack.c.h.b16 %v761
    %v1333 = vunpack.c.l.b16 %v762
    %v1334 = vunpack.c.h.b16 %v762
    %v1335 = vunpack.c.l.b16 %v763
    %v1336 = vunpack.c.h.b16 %v763
    %v1337 = vunpack.c.l.b16 %v764
    %v1338 = vunpack.c.h.b16 %v764
    %v1339 = vunpack.c.l.b16 %v765
    %v1340 = vunpack.c.h.b16 %v765
    %v1341 = vunpack.c.l.b16 %v766
    %v1342 = vunpack.c.h.b16 %v766
    %v1343 = vunpack.c.l.b16 %v767
    %v1344 = vunpack.c.h.b16 %v767
    %v1345 = vunpack.c.l.b16 %v768
    %v1346 = vunpack.c.h.b16 %v768
    %v1347 = vunpack.c.l.b16 %v769
    %v1348 = vunpack.c.h.b16 %v769
    %v1349 = vunpack.c.l.b16 %v770
    %v1350 = vunpack.c.h.b16 %v770
    %v1351 = vunpack.c.l.b16 %v771
    %v1352 = vunpack.c.h.b16 %v771
    %v1353 = vunpack.c.l.b16 %v772
    %v1354 = vunpack.c.h.b16 %v772
    %v1355 = vunpack.c.l.b16 %v773
    %v1356 = vunpack.c.h.b16 %v773
    %v1357 = vunpack.c.l.b16 %v774
    %v1358 = vunpack.c.h.b16 %v774
    %v1359 = vunpack.c.l.b16 %v775
    %v1360 = vunpack.c.h.b16 %v775
    %v1361 = vunpack.c.l.b16 %v776
    %v1362 = vunpack.c.h.b16 %v776
    %v1363 = vunpack.c.l.b16 %v777
    %v1364 = vunpack.c.h.b16 %v777
    %v1365 = vunpack.c.l.b16 %v778
    %v1366 = vunpack.c.h.b16 %v778
    %v1367 = vunpack.c.l.b16 %v779
    %v1368 = vunpack.c.h.b16 %v779
    %v1369 = vunpack.c.l.b16 %v780
    %v1370 = vunpack.c.h.b16 %v780
    %v1371 = vunpack.c.l.b16 %v781
    %v1372 = vunpack.c.h.b16 %v781
    %v1373 = vunpack.c.l.b16 %v782
    %v1374 = vunpack.c.h.b16 %v782
    %v1375 = vunpack.c.l.b16 %v783
    %v1376 = vunpack.c.h.b16 %v783
    %v1377 = vunpack.c.l.b16 %v784
    %v1378 = vunpack.c.h.b16 %v784
    %v1379 = vunpack.c.l.b16 %v785
    %v1380 = vunpack.c.h.b16 %v785
    %v1381 = vunpack.c.l.b16 %v786
    %v1382 = vunpack.c.h.b16 %v786
    %v1383 = vunpack.c.l.b16 %v787
    %v1384 = vunpack.c.h.b16 %v787
    %v1385 = vunpack.c.l.b16 %v788
    %v1386 = vunpack.c.h.b16 %v788
    %v1387 = vunpack.c.l.b16 %v789
    %v1388 = vunpack.c.h.b16 %v789
    %v1389 = vunpack.c.l.b16 %v790
    %v1390 = vunpack.c.h.b16 %v790
    %v1391 = vunpack.c.l.b16 %v791
    %v1392 = vunpack.c.h.b16 %v791
    %v1393 = vunpack.c.l.b16 %v792
    %v1394 = vunpack.c.h.b16 %v792
    %v1395 = vunpack.c.l.b16 %v793
    %v1396 = vunpack.c.h.b16 %v793
    %v1397 = vunpack.c.l.b16 %v794
    %v1398 = vunpack.c.h.b16 %v794
    %v1399 = vpack.c.b16 %v1019, %v1015
    %v1400 = vpack.c.b16 %v1020, %v1016
    %v1401 = vpack.c.b16 %v1021, %v1017
    %v1402 = vpack.c.b16 %v1022, %v1018
    %v1403 = vpack.c.b16 %v1027, %v1023
    %v1404 = vpack.c.b16 %v1028, %v1024
    %v1405 = vpack.c.b16 %v1029, %v1025
    %v1406 = vpack.c.b16 %v1030, %v1026
    %v1407 = vpack.c.b16 %v1035, %v1031
    %v1408 = vpack.c.b16 %v1036, %v1032
    %v1409 = vpack.c.b16 %v1037, %v1033
    %v1410 = vpack.c.b16 %v1038, %v1034
    %v1411 = vpack.c.b16 %v1043, %v1039
    %v1412 = vpack.c.b16 %v1044, %v1040
    %v1413 = vpack.c.b16 %v1045, %v1041
    %v1414 = vpack.c.b16 %v1046, %v1042
    %v1415 = vpack.c.b16 %v1051, %v1047
    %v1416 = vpack.c.b16 %v1052, %v1048
    %v1417 = vpack.c.b16 %v1053, %v1049
    %v1418 = vpack.c.b16 %v1054, %v1050
    %v1419 = vpack.c.b16 %v1059, %v1055
    %v1420 = vpack.c.b16 %v1060, %v1056
    %v1421 = vpack.c.b16 %v1061, %v1057
    %v1422 = vpack.c.b16 %v1062, %v1058
    %v1423 = vpack.c.b16 %v1067, %v1063
    %v1424 = vpack.c.b16 %v1068, %v1064
    %v1425 = vpack.c.b16 %v1069, %v1065
    %v1426 = vpack.c.b16 %v1070, %v1066
    %v1427 = vpack.c.b16 %v1075, %v1071
    %v1428 = vpack.c.b16 %v1076, %v1072
    %v1429 = vpack.c.b16 %v1077, %v1073
    %v1430 = vpack.c.b16 %v1078, %v1074
    %v1431 = vpack.c.b16 %v1083, %v1079
    %v1432 = vpack.c.b16 %v1084, %v1080
    %v1433 = vpack.c.b16 %v1085, %v1081
    %v1434 = vpack.c.b16 %v1086, %v1082
    %v1435 = vpack.c.b16 %v1091, %v1087
    %v1436 = vpack.c.b16 %v1092, %v1088
    %v1437 = vpack.c.b16 %v1093, %v1089
    %v1438 = vpack.c.b16 %v1094, %v1090
    %v1439 = vpack.c.b16 %v1099, %v1095
    %v1440 = vpack.c.b16 %v1100, %v1096
    %v1441 = vpack.c.b16 %v1101, %v1097
    %v1442 = vpack.c.b16 %v1102, %v1098
    %v1443 = vpack.c.b16 %v1107, %v1103
    %v1444 = vpack.c.b16 %v1108, %v1104
    %v1445 = vpack.c.b16 %v1109, %v1105
    %v1446 = vpack.c.b16 %v1110, %v1106
    %v1447 = vpack.c.b16 %v1115, %v1111
    %v1448 = vpack.c.b16 %v1116, %v1112
    %v1449 = vpack.c.b16 %v1117, %v1113
    %v1450 = vpack.c.b16 %v1118, %v1114
    %v1451 = vpack.c.b16 %v1123, %v1119
    %v1452 = vpack.c.b16 %v1124, %v1120
    %v1453 = vpack.c.b16 %v1125, %v1121
    %v1454 = vpack.c.b16 %v1126, %v1122
    %v1455 = vpack.c.b16 %v1131, %v1127
    %v1456 = vpack.c.b16 %v1132, %v1128
    %v1457 = vpack.c.b16 %v1133, %v1129
    %v1458 = vpack.c.b16 %v1134, %v1130
    %v1459 = vpack.c.b16 %v1139, %v1135
    %v1460 = vpack.c.b16 %v1140, %v1136
    %v1461 = vpack.c.b16 %v1141, %v1137
    %v1462 = vpack.c.b16 %v1142, %v1138
    %v1463 = vpack.c.b16 %v1147, %v1143
    %v1464 = vpack.c.b16 %v1148, %v1144
    %v1465 = vpack.c.b16 %v1149, %v1145
    %v1466 = vpack.c.b16 %v1150, %v1146
    %v1467 = vpack.c.b16 %v1155, %v1151
    %v1468 = vpack.c.b16 %v1156, %v1152
    %v1469 = vpack.c.b16 %v1157, %v1153
    %v1470 = vpack.c.b16 %v1158, %v1154
    %v1471 = vpack.c.b16 %v1163, %v1159
    %v1472 = vpack.c.b16 %v1164, %v1160
    %v1473 = vpack.c.b16 %v1165, %v1161
    %v1474 = vpack.c.b16 %v1166, %v1162
    %v1475 = vpack.c.b16 %v1171, %v1167
    %v1476 = vpack.c.b16 %v1172, %v1168
    %v1477 = vpack.c.b16 %v1173, %v1169
    %v1478 = vpack.c.b16 %v1174, %v1170
    %v1479 = vpack.c.b16 %v1179, %v1175
    %v1480 = vpack.c.b16 %v1180, %v1176
    %v1481 = vpack.c.b16 %v1181, %v1177
    %v1482 = vpack.c.b16 %v1182, %v1178
    %v1483 = vpack.c.b16 %v1187, %v1183
    %v1484 = vpack.c.b16 %v1188, %v1184
    %v1485 = vpack.c.b16 %v1189, %v1185
    %v1486 = vpack.c.b16 %v1190, %v1186
    %v1487 = vpack.c.b16 %v1195, %v1191
    %v1488 = vpack.c.b16 %v1196, %v1192
    %v1489 = vpack.c.b16 %v1197, %v1193
    %v1490 = vpack.c.b16 %v1198, %v1194
    %v1491 = vpack.c.b16 %v1203, %v1199
    %v1492 = vpack.c.b16 %v1204, %v1200
    %v1493 = vpack.c.b16 %v1205, %v1201
    %v1494 = vpack.c.b16 %v1206, %v1202
    %v1495 = vpack.c.b16 %v1211, %v1207
    %v1496 = vpack.c.b16 %v1212, %v1208
    %v1497 = vpack.c.b16 %v1213, %v1209
    %v1498 = vpack.c.b16 %v1214, %v1210
    %v1499 = vpack.c.b16 %v1219, %v1215
    %v1500 = vpack.c.b16 %v1220, %v1216
    %v1501 = vpack.c.b16 %v1221, %v1217
    %v1502 = vpack.c.b16 %v1222, %v1218
    %v1503 = vpack.c.b16 %v1227, %v1223
    %v1504 = vpack.c.b16 %v1228, %v1224
    %v1505 = vpack.c.b16 %v1229, %v1225
    %v1506 = vpack.c.b16 %v1230, %v1226
    %v1507 = vpack.c.b16 %v1235, %v1231
    %v1508 = vpack.c.b16 %v1236, %v1232
    %v1509 = vpack.c.b16 %v1237, %v1233
    %v1510 = vpack.c.b16 %v1238, %v1234
    %v1511 = vpack.c.b16 %v1243, %v1239
    %v1512 = vpack.c.b16 %v1244, %v1240
    %v1513 = vpack.c.b16 %v1245, %v1241
    %v1514 = vpack.c.b16 %v1246, %v1242
    %v1515 = vpack.c.b16 %v1251, %v1247
    %v1516 = vpack.c.b16 %v1252, %v1248
    %v1517 = vpack.c.b16 %v1253, %v1249
    %v1518 = vpack.c.b16 %v1254, %v1250
    %v1519 = vpack.c.b16 %v1259, %v1255
    %v1520 = vpack.c.b16 %v1260, %v1256
    %v1521 = vpack.c.b16 %v1261, %v1257
    %v1522 = vpack.c.b16 %v1262, %v1258
    %v1523 = vpack.c.b16 %v1267, %v1263
    %v1524 = vpack.c.b16 %v1268, %v1264
    %v1525 = vpack.c.b16 %v1269, %v1265
    %v1526 = vpack.c.b16 %v1270, %v1266
    %v1527 = vpack.c.b16 %v1275, %v1271
    %v1528 = vpack.c.b16 %v1276, %v1272
    %v1529 = vpack.c.b16 %v1277, %v1273
    %v1530 = vpack.c.b16 %v1278, %v1274
    %v1531 = vpack.c.b16 %v1283, %v1279
    %v1532 = vpack.c.b16 %v1284, %v1280
    %v1533 = vpack.c.b16 %v1285, %v1281
    %v1534 = vpack.c.b16 %v1286, %v1282
    %v1535 = vpack.c.b16 %v1291, %v1287
    %v1536 = vpack.c.b16 %v1292, %v1288
    %v1537 = vpack.c.b16 %v1293, %v1289
    %v1538 = vpack.c.b16 %v1294, %v1290
    %v1539 = vpack.c.b16 %v1299, %v1295
    %v1540 = vpack.c.b16 %v1300, %v1296
    %v1541 = vpack.c.b16 %v1301, %v1297
    %v1542 = vpack.c.b16 %v1302, %v1298
    %v1543 = vpack.c.b16 %v1307, %v1303
    %v1544 = vpack.c.b16 %v1308, %v1304
    %v1545 = vpack.c.b16 %v1309, %v1305
    %v1546 = vpack.c.b16 %v1310, %v1306
    %v1547 = vpack.c.b16 %v1315, %v1311
    %v1548 = vpack.c.b16 %v1316, %v1312
    %v1549 = vpack.c.b16 %v1317, %v1313
    %v1550 = vpack.c.b16 %v1318, %v1314
    %v1551 = vpack.c.b16 %v1323, %v1319
    %v1552 = vpack.c.b16 %v1324, %v1320
    %v1553 = vpack.c.b16 %v1325, %v1321
    %v1554 = vpack.c.b16 %v1326, %v1322
    %v1555 = vpack.c.b16 %v1331, %v1327
    %v1556 = vpack.c.b16 %v1332, %v1328
    %v1557 = vpack.c.b16 %v1333, %v1329
    %v1558 = vpack.c.b16 %v1334, %v1330
    %v1559 = vpack.c.b16 %v1339, %v1335
    %v1560 = vpack.c.b16 %v1340, %v1336
    %v1561 = vpack.c.b16 %v1341, %v1337
    %v1562 = vpack.c.b16 %v1342, %v1338
    %v1563 = vpack.c.b16 %v1347, %v1343
    %v1564 = vpack.c.b16 %v1348, %v1344
    %v1565 = vpack.c.b16 %v1349, %v1345
    %v1566 = vpack.c.b16 %v1350, %v1346
    %v1567 = vpack.c.b16 %v1355, %v1351
    %v1568 = vpack.c.b16 %v1356, %v1352
    %v1569 = vpack.c.b16 %v1357, %v1353
    %v1570 = vpack.c.b16 %v1358, %v1354
    %v1571 = vpack.c.b16 %v1363, %v1359
    %v1572 = vpack.c.b16 %v1364, %v1360
    %v1573 = vpack.c.b16 %v1365, %v1361
    %v1574 = vpack.c.b16 %v1366, %v1362
    %v1575 = vpack.c.b16 %v1371, %v1367
    %v1576 = vpack.c.b16 %v1372, %v1368
    %v1577 = vpack.c.b16 %v1373, %v1369
    %v1578 = vpack.c.b16 %v1374, %v1370
    %v1579 = vpack.c.b16 %v1379, %v1375
    %v1580 = vpack.c.b16 %v1380, %v1376
    %v1581 = vpack.c.b16 %v1381, %v1377
    %v1582 = vpack.c.b16 %v1382, %v1378
    %v1583 = vpack.c.b16 %v1387, %v1383
    %v1584 = vpack.c.b16 %v1388, %v1384
    %v1585 = vpack.c.b16 %v1389, %v1385
    %v1586 = vpack.c.b16 %v1390, %v1386
    %v1587 = vpack.c.b16 %v1395, %v1391
    %v1588 = vpack.c.b16 %v1396, %v1392
    %v1589 = vpack.c.b16 %v1397, %v1393
    %v1590 = vpack.c.b16 %v1398, %v1394
    %1783 = vmatprep.subr.bf16.mxu0 %v1400
    %1784 = vmatpush1.bf16.msra.mxu0 %v1399
    %1785 = vmatprep.subr.bf16.mxu0 %v1404
    %1786 = vmatpush1.bf16.msra.mxu0 %v1403
    %1787 = vmatprep.subr.bf16.mxu0 %v1408
    %1788 = vmatpush1.bf16.msra.mxu0 %v1407
    %1789 = vmatprep.subr.bf16.mxu0 %v1412
    %1790 = vmatpush1.bf16.msra.mxu0 %v1411
    %1791 = vmatprep.subr.bf16.mxu0 %v1416
    %1792 = vmatpush1.bf16.msra.mxu0 %v1415
    %1793 = vmatprep.subr.bf16.mxu0 %v1420
    %1794 = vmatpush1.bf16.msra.mxu0 %v1419
    %1795 = vmatprep.subr.bf16.mxu0 %v1424
    %1796 = vmatpush1.bf16.msra.mxu0 %v1423
    %1797 = vmatprep.subr.bf16.mxu0 %v1428
    %1798 = vmatpush1.bf16.msra.mxu0 %v1427
    %1799 = vmatprep.subr.bf16.mxu0 %v1432
    %1800 = vmatpush1.bf16.msra.mxu0 %v1431
    %1801 = vmatprep.subr.bf16.mxu0 %v1436
    %1802 = vmatpush1.bf16.msra.mxu0 %v1435
    %1803 = vmatprep.subr.bf16.mxu0 %v1440
    %1804 = vmatpush1.bf16.msra.mxu0 %v1439
    %1805 = vmatprep.subr.bf16.mxu0 %v1444
    %1806 = vmatpush1.bf16.msra.mxu0 %v1443
    %1807 = vmatprep.subr.bf16.mxu0 %v1448
    %1808 = vmatpush1.bf16.msra.mxu0 %v1447
    %1809 = vmatprep.subr.bf16.mxu0 %v1452
    %1810 = vmatpush1.bf16.msra.mxu0 %v1451
    %1811 = vmatprep.subr.bf16.mxu0 %v1456
    %1812 = vmatpush1.bf16.msra.mxu0 %v1455
    %1813 = vmatprep.subr.bf16.mxu0 %v1460
    %1814 = vmatpush1.bf16.msra.mxu0 %v1459
    %1815 = vmatprep.mubr.bf16.mxu0 %v797
    %1816 = vmatmul.mubr.bf16.gmra.mrb[0].mxu0 %v796
    %v1817 = vpop.f32.mrb[0].mxu0
    %v1818 = vadd.f32 %v806, %v1817
    %v1819 = vpop.f32.mrb[0].mxu0
    %v1820 = vadd.f32 %v810, %v1819
    %v1821 = vpop.f32.mrb[0].mxu0
    %v1822 = vpop.f32.mrb[0].mxu0
    %1823 = vdwg.mxu0
    %1824 = vmatprep.subr.bf16.mxu0 %v1464
    %1825 = vmatpush1.bf16.msra.mxu0 %v1463
    %1826 = vmatprep.subr.bf16.mxu0 %v1468
    %1827 = vmatpush1.bf16.msra.mxu0 %v1467
    %1828 = vmatprep.subr.bf16.mxu0 %v1472
    %1829 = vmatpush1.bf16.msra.mxu0 %v1471
    %1830 = vmatprep.subr.bf16.mxu0 %v1476
    %1831 = vmatpush1.bf16.msra.mxu0 %v1475
    %1832 = vmatprep.subr.bf16.mxu0 %v1480
    %1833 = vmatpush1.bf16.msra.mxu0 %v1479
    %1834 = vmatprep.subr.bf16.mxu0 %v1484
    %1835 = vmatpush1.bf16.msra.mxu0 %v1483
    %1836 = vmatprep.subr.bf16.mxu0 %v1488
    %1837 = vmatpush1.bf16.msra.mxu0 %v1487
    %1838 = vmatprep.subr.bf16.mxu0 %v1492
    %1839 = vmatpush1.bf16.msra.mxu0 %v1491
    %1840 = vmatprep.subr.bf16.mxu0 %v1496
    %1841 = vmatpush1.bf16.msra.mxu0 %v1495
    %1842 = vmatprep.subr.bf16.mxu0 %v1500
    %1843 = vmatpush1.bf16.msra.mxu0 %v1499
    %1844 = vmatprep.subr.bf16.mxu0 %v1504
    %1845 = vmatpush1.bf16.msra.mxu0 %v1503
    %1846 = vmatprep.subr.bf16.mxu0 %v1508
    %1847 = vmatpush1.bf16.msra.mxu0 %v1507
    %1848 = vmatprep.subr.bf16.mxu0 %v1512
    %1849 = vmatpush1.bf16.msra.mxu0 %v1511
    %1850 = vmatprep.subr.bf16.mxu0 %v1516
    %1851 = vmatpush1.bf16.msra.mxu0 %v1515
    %1852 = vmatprep.subr.bf16.mxu0 %v1520
    %1853 = vmatpush1.bf16.msra.mxu0 %v1519
    %1854 = vmatprep.subr.bf16.mxu0 %v1524
    %1855 = vmatpush1.bf16.msra.mxu0 %v1523
    %1856 = vmatprep.mubr.bf16.mxu0 %v799
    %1857 = vmatmul.mubr.bf16.gmra.mrb[0].mxu0 %v798
    %v1858 = vpop.f32.mrb[0].mxu0
    %v1859 = vadd.f32 %v1818, %v1858
    %v1860 = vpop.f32.mrb[0].mxu0
    %v1861 = vadd.f32 %v1820, %v1860
    %v1862 = vpop.f32.mrb[0].mxu0
    %v1863 = vpop.f32.mrb[0].mxu0
    %1864 = vdwg.mxu0
    %1865 = vmatprep.subr.bf16.mxu0 %v1528
    %1866 = vmatpush1.bf16.msra.mxu0 %v1527
    %1867 = vmatprep.subr.bf16.mxu0 %v1532
    %1868 = vmatpush1.bf16.msra.mxu0 %v1531
    %1869 = vmatprep.subr.bf16.mxu0 %v1536
    %1870 = vmatpush1.bf16.msra.mxu0 %v1535
    %1871 = vmatprep.subr.bf16.mxu0 %v1540
    %1872 = vmatpush1.bf16.msra.mxu0 %v1539
    %1873 = vmatprep.subr.bf16.mxu0 %v1544
    %1874 = vmatpush1.bf16.msra.mxu0 %v1543
    %1875 = vmatprep.subr.bf16.mxu0 %v1548
    %1876 = vmatpush1.bf16.msra.mxu0 %v1547
    %1877 = vmatprep.subr.bf16.mxu0 %v1552
    %1878 = vmatpush1.bf16.msra.mxu0 %v1551
    %1879 = vmatprep.subr.bf16.mxu0 %v1556
    %1880 = vmatpush1.bf16.msra.mxu0 %v1555
    %1881 = vmatprep.subr.bf16.mxu0 %v1560
    %1882 = vmatpush1.bf16.msra.mxu0 %v1559
    %1883 = vmatprep.subr.bf16.mxu0 %v1564
    %1884 = vmatpush1.bf16.msra.mxu0 %v1563
    %1885 = vmatprep.subr.bf16.mxu0 %v1568
    %1886 = vmatpush1.bf16.msra.mxu0 %v1567
    %1887 = vmatprep.subr.bf16.mxu0 %v1572
    %1888 = vmatpush1.bf16.msra.mxu0 %v1571
    %1889 = vmatprep.subr.bf16.mxu0 %v1576
    %1890 = vmatpush1.bf16.msra.mxu0 %v1575
    %1891 = vmatprep.subr.bf16.mxu0 %v1580
    %1892 = vmatpush1.bf16.msra.mxu0 %v1579
    %1893 = vmatprep.subr.bf16.mxu0 %v1584
    %1894 = vmatpush1.bf16.msra.mxu0 %v1583
    %1895 = vmatprep.subr.bf16.mxu0 %v1588
    %1896 = vmatpush1.bf16.msra.mxu0 %v1587
    %1897 = vmatprep.mubr.bf16.mxu0 %v801
    %1898 = vmatmul.mubr.bf16.gmra.mrb[0].mxu0 %v800
    %v1899 = vpop.f32.mrb[0].mxu0
    %v1900 = vadd.f32 %v1859, %v1899
    %v1901 = vpop.f32.mrb[0].mxu0
    %v1902 = vadd.f32 %v1861, %v1901
    %v1903 = vpop.f32.mrb[0].mxu0
    %v1904 = vpop.f32.mrb[0].mxu0
    %1905 = vdwg.mxu0
    %1906 = vmatprep.subr.bf16.mxu0 %v1402
    %1907 = vmatpush1.bf16.msra.mxu0 %v1401
    %1908 = vmatprep.subr.bf16.mxu0 %v1406
    %1909 = vmatpush1.bf16.msra.mxu0 %v1405
    %1910 = vmatprep.subr.bf16.mxu0 %v1410
    %1911 = vmatpush1.bf16.msra.mxu0 %v1409
    %1912 = vmatprep.subr.bf16.mxu0 %v1414
    %1913 = vmatpush1.bf16.msra.mxu0 %v1413
    %1914 = vmatprep.subr.bf16.mxu0 %v1418
    %1915 = vmatpush1.bf16.msra.mxu0 %v1417
    %1916 = vmatprep.subr.bf16.mxu0 %v1422
    %1917 = vmatpush1.bf16.msra.mxu0 %v1421
    %1918 = vmatprep.subr.bf16.mxu0 %v1426
    %1919 = vmatpush1.bf16.msra.mxu0 %v1425
    %1920 = vmatprep.subr.bf16.mxu0 %v1430
    %1921 = vmatpush1.bf16.msra.mxu0 %v1429
    %1922 = vmatprep.subr.bf16.mxu0 %v1434
    %1923 = vmatpush1.bf16.msra.mxu0 %v1433
    %1924 = vmatprep.subr.bf16.mxu0 %v1438
    %1925 = vmatpush1.bf16.msra.mxu0 %v1437
    %1926 = vmatprep.subr.bf16.mxu0 %v1442
    %1927 = vmatpush1.bf16.msra.mxu0 %v1441
    %1928 = vmatprep.subr.bf16.mxu0 %v1446
    %1929 = vmatpush1.bf16.msra.mxu0 %v1445
    %1930 = vmatprep.subr.bf16.mxu0 %v1450
    %1931 = vmatpush1.bf16.msra.mxu0 %v1449
    %1932 = vmatprep.subr.bf16.mxu0 %v1454
    %1933 = vmatpush1.bf16.msra.mxu0 %v1453
    %1934 = vmatprep.subr.bf16.mxu0 %v1458
    %1935 = vmatpush1.bf16.msra.mxu0 %v1457
    %1936 = vmatprep.subr.bf16.mxu0 %v1462
    %1937 = vmatpush1.bf16.msra.mxu0 %v1461
    %1938 = vmatprep.mubr.bf16.mxu0 %v797
    %1939 = vmatmul.mubr.bf16.gmra.mrb[0].mxu0 %v796
    %v1940 = vpop.f32.mrb[0].mxu0
    %v1941 = vadd.f32 %v814, %v1940
    %v1942 = vpop.f32.mrb[0].mxu0
    %v1943 = vadd.f32 %v818, %v1942
    %v1944 = vpop.f32.mrb[0].mxu0
    %v1945 = vpop.f32.mrb[0].mxu0
    %1946 = vdwg.mxu0
    %1947 = vmatprep.subr.bf16.mxu0 %v1466
    %1948 = vmatpush1.bf16.msra.mxu0 %v1465
    %1949 = vmatprep.subr.bf16.mxu0 %v1470
    %1950 = vmatpush1.bf16.msra.mxu0 %v1469
    %1951 = vmatprep.subr.bf16.mxu0 %v1474
    %1952 = vmatpush1.bf16.msra.mxu0 %v1473
    %1953 = vmatprep.subr.bf16.mxu0 %v1478
    %1954 = vmatpush1.bf16.msra.mxu0 %v1477
    %1955 = vmatprep.subr.bf16.mxu0 %v1482
    %1956 = vmatpush1.bf16.msra.mxu0 %v1481
    %1957 = vmatprep.subr.bf16.mxu0 %v1486
    %1958 = vmatpush1.bf16.msra.mxu0 %v1485
    %1959 = vmatprep.subr.bf16.mxu0 %v1490
    %1960 = vmatpush1.bf16.msra.mxu0 %v1489
    %1961 = vmatprep.subr.bf16.mxu0 %v1494
    %1962 = vmatpush1.bf16.msra.mxu0 %v1493
    %1963 = vmatprep.subr.bf16.mxu0 %v1498
    %1964 = vmatpush1.bf16.msra.mxu0 %v1497
    %1965 = vmatprep.subr.bf16.mxu0 %v1502
    %1966 = vmatpush1.bf16.msra.mxu0 %v1501
    %1967 = vmatprep.subr.bf16.mxu0 %v1506
    %1968 = vmatpush1.bf16.msra.mxu0 %v1505
    %1969 = vmatprep.subr.bf16.mxu0 %v1510
    %1970 = vmatpush1.bf16.msra.mxu0 %v1509
    %1971 = vmatprep.subr.bf16.mxu0 %v1514
    %1972 = vmatpush1.bf16.msra.mxu0 %v1513
    %1973 = vmatprep.subr.bf16.mxu0 %v1518
    %1974 = vmatpush1.bf16.msra.mxu0 %v1517
    %1975 = vmatprep.subr.bf16.mxu0 %v1522
    %1976 = vmatpush1.bf16.msra.mxu0 %v1521
    %1977 = vmatprep.subr.bf16.mxu0 %v1526
    %1978 = vmatpush1.bf16.msra.mxu0 %v1525
    %1979 = vmatprep.mubr.bf16.mxu0 %v799
    %1980 = vmatmul.mubr.bf16.gmra.mrb[0].mxu0 %v798
    %v1981 = vpop.f32.mrb[0].mxu0
    %v1982 = vadd.f32 %v1941, %v1981
    %v1983 = vpop.f32.mrb[0].mxu0
    %v1984 = vadd.f32 %v1943, %v1983
    %v1985 = vpop.f32.mrb[0].mxu0
    %v1986 = vpop.f32.mrb[0].mxu0
    %1987 = vdwg.mxu0
    %1988 = vmatprep.subr.bf16.mxu0 %v1530
    %1989 = vmatpush1.bf16.msra.mxu0 %v1529
    %1990 = vmatprep.subr.bf16.mxu0 %v1534
    %1991 = vmatpush1.bf16.msra.mxu0 %v1533
    %1992 = vmatprep.subr.bf16.mxu0 %v1538
    %1993 = vmatpush1.bf16.msra.mxu0 %v1537
    %1994 = vmatprep.subr.bf16.mxu0 %v1542
    %1995 = vmatpush1.bf16.msra.mxu0 %v1541
    %1996 = vmatprep.subr.bf16.mxu0 %v1546
    %1997 = vmatpush1.bf16.msra.mxu0 %v1545
    %1998 = vmatprep.subr.bf16.mxu0 %v1550
    %1999 = vmatpush1.bf16.msra.mxu0 %v1549
    %2000 = vmatprep.subr.bf16.mxu0 %v1554
    %2001 = vmatpush1.bf16.msra.mxu0 %v1553
    %2002 = vmatprep.subr.bf16.mxu0 %v1558
    %2003 = vmatpush1.bf16.msra.mxu0 %v1557
    %2004 = vmatprep.subr.bf16.mxu0 %v1562
    %2005 = vmatpush1.bf16.msra.mxu0 %v1561
    %2006 = vmatprep.subr.bf16.mxu0 %v1566
    %2007 = vmatpush1.bf16.msra.mxu0 %v1565
    %2008 = vmatprep.subr.bf16.mxu0 %v1570
    %2009 = vmatpush1.bf16.msra.mxu0 %v1569
    %2010 = vmatprep.subr.bf16.mxu0 %v1574
    %2011 = vmatpush1.bf16.msra.mxu0 %v1573
    %2012 = vmatprep.subr.bf16.mxu0 %v1578
    %2013 = vmatpush1.bf16.msra.mxu0 %v1577
    %2014 = vmatprep.subr.bf16.mxu0 %v1582
    %2015 = vmatpush1.bf16.msra.mxu0 %v1581
    %2016 = vmatprep.subr.bf16.mxu0 %v1586
    %2017 = vmatpush1.bf16.msra.mxu0 %v1585
    %2018 = vmatprep.subr.bf16.mxu0 %v1590
    %2019 = vmatpush1.bf16.msra.mxu0 %v1589
    %2020 = vmatprep.mubr.bf16.mxu0 %v801
    %2021 = vmatmul.mubr.bf16.gmra.mrb[0].mxu0 %v800
    %v2022 = vpop.f32.mrb[0].mxu0
    %v2023 = vadd.f32 %v1982, %v2022
    %v2024 = vpop.f32.mrb[0].mxu0
    %v2025 = vadd.f32 %v1984, %v2024
    %v2026 = vpop.f32.mrb[0].mxu0
    %v2027 = vpop.f32.mrb[0].mxu0
    %2028 = vdwg.mxu0
    %v2029 = vtanh.pop %v1900
    %v2030 = vtanh.pop %v1902
    %v2031 = vtanh.pop %v2023
    %v2032 = vtanh.pop %v2025
    %v2033 = vld [vmem:[#allocation6] sm:$0xff]
    %v2034 = vld [vmem:[#allocation6 + $0x8] sm:$0xff]
    %v2035 = vld [vmem:[#allocation6 + $0x10] sm:$0xff]
    %v2036 = vld [vmem:[#allocation6 + $0x18] sm:$0xff]
    %v2037 = vld [vmem:[#allocation6 + $0x20] sm:$0xff]
    %v2038 = vld [vmem:[#allocation6 + $0x28] sm:$0xff]
    %v2039 = vld [vmem:[#allocation6 + $0x30] sm:$0xff]
    %v2040 = vld [vmem:[#allocation6 + $0x38] sm:$0xff]
    %v2041 = vld [vmem:[#allocation6 + $0x40] sm:$0xff]
    %v2042 = vld [vmem:[#allocation6 + $0x48] sm:$0xff]
    %v2043 = vld [vmem:[#allocation6 + $0x50] sm:$0xff]
    %v2044 = vld [vmem:[#allocation6 + $0x58] sm:$0xff]
    %v2045 = vld [vmem:[#allocation6 + $0x60] sm:$0xff]
    %v2046 = vld [vmem:[#allocation6 + $0x68] sm:$0xff]
    %v2047 = vld [vmem:[#allocation6 + $0x70] sm:$0xff]
    %v2048 = vld [vmem:[#allocation6 + $0x78] sm:$0xff]
    %v2049 = vld [vmem:[#allocation6 + $0x80] sm:$0xff]
    %v2050 = vld [vmem:[#allocation6 + $0x88] sm:$0xff]
    %v2051 = vld [vmem:[#allocation6 + $0x90] sm:$0xff]
    %v2052 = vld [vmem:[#allocation6 + $0x98] sm:$0xff]
    %v2053 = vld [vmem:[#allocation6 + $0xa0] sm:$0xff]
    %v2054 = vld [vmem:[#allocation6 + $0xa8] sm:$0xff]
    %v2055 = vld [vmem:[#allocation6 + $0xb0] sm:$0xff]
    %v2056 = vld [vmem:[#allocation6 + $0xb8] sm:$0xff]
    %v2057 = vld [vmem:[#allocation6 + $0xc0] sm:$0xff]
    %v2058 = vld [vmem:[#allocation6 + $0xc8] sm:$0xff]
    %v2059 = vld [vmem:[#allocation6 + $0xd0] sm:$0xff]
    %v2060 = vld [vmem:[#allocation6 + $0xd8] sm:$0xff]
    %v2061 = vld [vmem:[#allocation6 + $0xe0] sm:$0xff]
    %v2062 = vld [vmem:[#allocation6 + $0xe8] sm:$0xff]
    %v2063 = vld [vmem:[#allocation6 + $0xf0] sm:$0xff]
    %v2064 = vld [vmem:[#allocation6 + $0xf8] sm:$0xff]
    %v2065 = vld [vmem:[#allocation6 + $0x100] sm:$0xff]
    %v2066 = vld [vmem:[#allocation6 + $0x108] sm:$0xff]
    %v2067 = vld [vmem:[#allocation6 + $0x110] sm:$0xff]
    %v2068 = vld [vmem:[#allocation6 + $0x118] sm:$0xff]
    %v2069 = vld [vmem:[#allocation6 + $0x120] sm:$0xff]
    %v2070 = vld [vmem:[#allocation6 + $0x128] sm:$0xff]
    %v2071 = vld [vmem:[#allocation6 + $0x130] sm:$0xff]
    %v2072 = vld [vmem:[#allocation6 + $0x138] sm:$0xff]
    %v2073 = vld [vmem:[#allocation6 + $0x140] sm:$0xff]
    %v2074 = vld [vmem:[#allocation6 + $0x148] sm:$0xff]
    %v2075 = vld [vmem:[#allocation6 + $0x150] sm:$0xff]
    %v2076 = vld [vmem:[#allocation6 + $0x158] sm:$0xff]
    %v2077 = vld [vmem:[#allocation6 + $0x160] sm:$0xff]
    %v2078 = vld [vmem:[#allocation6 + $0x168] sm:$0xff]
    %v2079 = vld [vmem:[#allocation6 + $0x170] sm:$0xff]
    %v2080 = vld [vmem:[#allocation6 + $0x178] sm:$0xff]
    %v2081 = vld [vmem:[#allocation6 + $0x180] sm:$0xff]
    %v2082 = vld [vmem:[#allocation6 + $0x188] sm:$0xff]
    %v2083 = vld [vmem:[#allocation6 + $0x190] sm:$0xff]
    %v2084 = vld [vmem:[#allocation6 + $0x198] sm:$0xff]
    %v2085 = vld [vmem:[#allocation6 + $0x1a0] sm:$0xff]
    %v2086 = vld [vmem:[#allocation6 + $0x1a8] sm:$0xff]
    %v2087 = vld [vmem:[#allocation6 + $0x1b0] sm:$0xff]
    %v2088 = vld [vmem:[#allocation6 + $0x1b8] sm:$0xff]
    %v2089 = vld [vmem:[#allocation6 + $0x1c0] sm:$0xff]
    %v2090 = vld [vmem:[#allocation6 + $0x1c8] sm:$0xff]
    %v2091 = vld [vmem:[#allocation6 + $0x1d0] sm:$0xff]
    %v2092 = vld [vmem:[#allocation6 + $0x1d8] sm:$0xff]
    %v2093 = vld [vmem:[#allocation6 + $0x1e0] sm:$0xff]
    %v2094 = vld [vmem:[#allocation6 + $0x1e8] sm:$0xff]
    %v2095 = vld [vmem:[#allocation6 + $0x1f0] sm:$0xff]
    %v2096 = vld [vmem:[#allocation6 + $0x1f8] sm:$0xff]
    %v2097 = vld [vmem:[%s6] sm:$0x3]
    %v2098 = vpack.c.bf16 %v2029, %v2029
    %v2099 = vpack.c.bf16 %v2030, %v2030
    %v2100 = vpack.c.bf16 %v2031, %v2031
    %v2101 = vpack.c.bf16 %v2032, %v2032
    %v2103 = vlaneseq
    %v2104 = vshrl.u32 %v2103, 7
    %v2105 = vsub.s32 0, %v2104
    %v2106 = vrot.slane %v2097, %v2105
    %v2107 = vlaneseq
    %v2108 = vshrl.u32 %v2107, 7
    %v2109 = vsub.s32 1, %v2108
    %v2110 = vrot.slane %v2097, %v2109
    %v2177 = vunpack.c.l.b16 %v2033
    %v2178 = vunpack.c.h.b16 %v2033
    %v2179 = vunpack.c.l.b16 %v2034
    %v2180 = vunpack.c.h.b16 %v2034
    %v2181 = vunpack.c.l.b16 %v2035
    %v2182 = vunpack.c.h.b16 %v2035
    %v2183 = vunpack.c.l.b16 %v2036
    %v2184 = vunpack.c.h.b16 %v2036
    %v2185 = vunpack.c.l.b16 %v2037
    %v2186 = vunpack.c.h.b16 %v2037
    %v2187 = vunpack.c.l.b16 %v2038
    %v2188 = vunpack.c.h.b16 %v2038
    %v2189 = vunpack.c.l.b16 %v2039
    %v2190 = vunpack.c.h.b16 %v2039
    %v2191 = vunpack.c.l.b16 %v2040
    %v2192 = vunpack.c.h.b16 %v2040
    %v2193 = vunpack.c.l.b16 %v2041
    %v2194 = vunpack.c.h.b16 %v2041
    %v2195 = vunpack.c.l.b16 %v2042
    %v2196 = vunpack.c.h.b16 %v2042
    %v2197 = vunpack.c.l.b16 %v2043
    %v2198 = vunpack.c.h.b16 %v2043
    %v2199 = vunpack.c.l.b16 %v2044
    %v2200 = vunpack.c.h.b16 %v2044
    %v2201 = vunpack.c.l.b16 %v2045
    %v2202 = vunpack.c.h.b16 %v2045
    %v2203 = vunpack.c.l.b16 %v2046
    %v2204 = vunpack.c.h.b16 %v2046
    %v2205 = vunpack.c.l.b16 %v2047
    %v2206 = vunpack.c.h.b16 %v2047
    %v2207 = vunpack.c.l.b16 %v2048
    %v2208 = vunpack.c.h.b16 %v2048
    %v2209 = vunpack.c.l.b16 %v2049
    %v2210 = vunpack.c.h.b16 %v2049
    %v2211 = vunpack.c.l.b16 %v2050
    %v2212 = vunpack.c.h.b16 %v2050
    %v2213 = vunpack.c.l.b16 %v2051
    %v2214 = vunpack.c.h.b16 %v2051
    %v2215 = vunpack.c.l.b16 %v2052
    %v2216 = vunpack.c.h.b16 %v2052
    %v2217 = vunpack.c.l.b16 %v2053
    %v2218 = vunpack.c.h.b16 %v2053
    %v2219 = vunpack.c.l.b16 %v2054
    %v2220 = vunpack.c.h.b16 %v2054
    %v2221 = vunpack.c.l.b16 %v2055
    %v2222 = vunpack.c.h.b16 %v2055
    %v2223 = vunpack.c.l.b16 %v2056
    %v2224 = vunpack.c.h.b16 %v2056
    %v2225 = vunpack.c.l.b16 %v2057
    %v2226 = vunpack.c.h.b16 %v2057
    %v2227 = vunpack.c.l.b16 %v2058
    %v2228 = vunpack.c.h.b16 %v2058
    %v2229 = vunpack.c.l.b16 %v2059
    %v2230 = vunpack.c.h.b16 %v2059
    %v2231 = vunpack.c.l.b16 %v2060
    %v2232 = vunpack.c.h.b16 %v2060
    %v2233 = vunpack.c.l.b16 %v2061
    %v2234 = vunpack.c.h.b16 %v2061
    %v2235 = vunpack.c.l.b16 %v2062
    %v2236 = vunpack.c.h.b16 %v2062
    %v2237 = vunpack.c.l.b16 %v2063
    %v2238 = vunpack.c.h.b16 %v2063
    %v2239 = vunpack.c.l.b16 %v2064
    %v2240 = vunpack.c.h.b16 %v2064
    %v2241 = vunpack.c.l.b16 %v2065
    %v2242 = vunpack.c.h.b16 %v2065
    %v2243 = vunpack.c.l.b16 %v2066
    %v2244 = vunpack.c.h.b16 %v2066
    %v2245 = vunpack.c.l.b16 %v2067
    %v2246 = vunpack.c.h.b16 %v2067
    %v2247 = vunpack.c.l.b16 %v2068
    %v2248 = vunpack.c.h.b16 %v2068
    %v2249 = vunpack.c.l.b16 %v2069
    %v2250 = vunpack.c.h.b16 %v2069
    %v2251 = vunpack.c.l.b16 %v2070
    %v2252 = vunpack.c.h.b16 %v2070
    %v2253 = vunpack.c.l.b16 %v2071
    %v2254 = vunpack.c.h.b16 %v2071
    %v2255 = vunpack.c.l.b16 %v2072
    %v2256 = vunpack.c.h.b16 %v2072
    %v2257 = vunpack.c.l.b16 %v2073
    %v2258 = vunpack.c.h.b16 %v2073
    %v2259 = vunpack.c.l.b16 %v2074
    %v2260 = vunpack.c.h.b16 %v2074
    %v2261 = vunpack.c.l.b16 %v2075
    %v2262 = vunpack.c.h.b16 %v2075
    %v2263 = vunpack.c.l.b16 %v2076
    %v2264 = vunpack.c.h.b16 %v2076
    %v2265 = vunpack.c.l.b16 %v2077
    %v2266 = vunpack.c.h.b16 %v2077
    %v2267 = vunpack.c.l.b16 %v2078
    %v2268 = vunpack.c.h.b16 %v2078
    %v2269 = vunpack.c.l.b16 %v2079
    %v2270 = vunpack.c.h.b16 %v2079
    %v2271 = vunpack.c.l.b16 %v2080
    %v2272 = vunpack.c.h.b16 %v2080
    %v2273 = vunpack.c.l.b16 %v2081
    %v2274 = vunpack.c.h.b16 %v2081
    %v2275 = vunpack.c.l.b16 %v2082
    %v2276 = vunpack.c.h.b16 %v2082
    %v2277 = vunpack.c.l.b16 %v2083
    %v2278 = vunpack.c.h.b16 %v2083
    %v2279 = vunpack.c.l.b16 %v2084
    %v2280 = vunpack.c.h.b16 %v2084
    %v2281 = vunpack.c.l.b16 %v2085
    %v2282 = vunpack.c.h.b16 %v2085
    %v2283 = vunpack.c.l.b16 %v2086
    %v2284 = vunpack.c.h.b16 %v2086
    %v2285 = vunpack.c.l.b16 %v2087
    %v2286 = vunpack.c.h.b16 %v2087
    %v2287 = vunpack.c.l.b16 %v2088
    %v2288 = vunpack.c.h.b16 %v2088
    %v2289 = vunpack.c.l.b16 %v2089
    %v2290 = vunpack.c.h.b16 %v2089
    %v2291 = vunpack.c.l.b16 %v2090
    %v2292 = vunpack.c.h.b16 %v2090
    %v2293 = vunpack.c.l.b16 %v2091
    %v2294 = vunpack.c.h.b16 %v2091
    %v2295 = vunpack.c.l.b16 %v2092
    %v2296 = vunpack.c.h.b16 %v2092
    %v2297 = vunpack.c.l.b16 %v2093
    %v2298 = vunpack.c.h.b16 %v2093
    %v2299 = vunpack.c.l.b16 %v2094
    %v2300 = vunpack.c.h.b16 %v2094
    %v2301 = vunpack.c.l.b16 %v2095
    %v2302 = vunpack.c.h.b16 %v2095
    %v2303 = vunpack.c.l.b16 %v2096
    %v2304 = vunpack.c.h.b16 %v2096
    %v2305 = vpack.c.b16 %v2179, %v2177
    %v2306 = vpack.c.b16 %v2180, %v2178
    %v2307 = vpack.c.b16 %v2183, %v2181
    %v2308 = vpack.c.b16 %v2184, %v2182
    %v2309 = vpack.c.b16 %v2187, %v2185
    %v2310 = vpack.c.b16 %v2188, %v2186
    %v2311 = vpack.c.b16 %v2191, %v2189
    %v2312 = vpack.c.b16 %v2192, %v2190
    %v2313 = vpack.c.b16 %v2195, %v2193
    %v2314 = vpack.c.b16 %v2196, %v2194
    %v2315 = vpack.c.b16 %v2199, %v2197
    %v2316 = vpack.c.b16 %v2200, %v2198
    %v2317 = vpack.c.b16 %v2203, %v2201
    %v2318 = vpack.c.b16 %v2204, %v2202
    %v2319 = vpack.c.b16 %v2207, %v2205
    %v2320 = vpack.c.b16 %v2208, %v2206
    %v2321 = vpack.c.b16 %v2211, %v2209
    %v2322 = vpack.c.b16 %v2212, %v2210
    %v2323 = vpack.c.b16 %v2215, %v2213
    %v2324 = vpack.c.b16 %v2216, %v2214
    %v2325 = vpack.c.b16 %v2219, %v2217
    %v2326 = vpack.c.b16 %v2220, %v2218
    %v2327 = vpack.c.b16 %v2223, %v2221
    %v2328 = vpack.c.b16 %v2224, %v2222
    %v2329 = vpack.c.b16 %v2227, %v2225
    %v2330 = vpack.c.b16 %v2228, %v2226
    %v2331 = vpack.c.b16 %v2231, %v2229
    %v2332 = vpack.c.b16 %v2232, %v2230
    %v2333 = vpack.c.b16 %v2235, %v2233
    %v2334 = vpack.c.b16 %v2236, %v2234
    %v2335 = vpack.c.b16 %v2239, %v2237
    %v2336 = vpack.c.b16 %v2240, %v2238
    %v2337 = vpack.c.b16 %v2243, %v2241
    %v2338 = vpack.c.b16 %v2244, %v2242
    %v2339 = vpack.c.b16 %v2247, %v2245
    %v2340 = vpack.c.b16 %v2248, %v2246
    %v2341 = vpack.c.b16 %v2251, %v2249
    %v2342 = vpack.c.b16 %v2252, %v2250
    %v2343 = vpack.c.b16 %v2255, %v2253
    %v2344 = vpack.c.b16 %v2256, %v2254
    %v2345 = vpack.c.b16 %v2259, %v2257
    %v2346 = vpack.c.b16 %v2260, %v2258
    %v2347 = vpack.c.b16 %v2263, %v2261
    %v2348 = vpack.c.b16 %v2264, %v2262
    %v2349 = vpack.c.b16 %v2267, %v2265
    %v2350 = vpack.c.b16 %v2268, %v2266
    %v2351 = vpack.c.b16 %v2271, %v2269
    %v2352 = vpack.c.b16 %v2272, %v2270
    %v2353 = vpack.c.b16 %v2275, %v2273
    %v2354 = vpack.c.b16 %v2276, %v2274
    %v2355 = vpack.c.b16 %v2279, %v2277
    %v2356 = vpack.c.b16 %v2280, %v2278
    %v2357 = vpack.c.b16 %v2283, %v2281
    %v2358 = vpack.c.b16 %v2284, %v2282
    %v2359 = vpack.c.b16 %v2287, %v2285
    %v2360 = vpack.c.b16 %v2288, %v2286
    %v2361 = vpack.c.b16 %v2291, %v2289
    %v2362 = vpack.c.b16 %v2292, %v2290
    %v2363 = vpack.c.b16 %v2295, %v2293
    %v2364 = vpack.c.b16 %v2296, %v2294
    %v2365 = vpack.c.b16 %v2299, %v2297
    %v2366 = vpack.c.b16 %v2300, %v2298
    %v2367 = vpack.c.b16 %v2303, %v2301
    %v2368 = vpack.c.b16 %v2304, %v2302
    %2433 = vmatprep.subr.bf16.mxu0 %v2306
    %2434 = vmatpush1.bf16.msra.mxu0 %v2305
    %2435 = vmatprep.subr.bf16.mxu0 %v2308
    %2436 = vmatpush1.bf16.msra.mxu0 %v2307
    %2437 = vmatprep.subr.bf16.mxu0 %v2310
    %2438 = vmatpush1.bf16.msra.mxu0 %v2309
    %2439 = vmatprep.subr.bf16.mxu0 %v2312
    %2440 = vmatpush1.bf16.msra.mxu0 %v2311
    %2441 = vmatprep.subr.bf16.mxu0 %v2314
    %2442 = vmatpush1.bf16.msra.mxu0 %v2313
    %2443 = vmatprep.subr.bf16.mxu0 %v2316
    %2444 = vmatpush1.bf16.msra.mxu0 %v2315
    %2445 = vmatprep.subr.bf16.mxu0 %v2318
    %2446 = vmatpush1.bf16.msra.mxu0 %v2317
    %2447 = vmatprep.subr.bf16.mxu0 %v2320
    %2448 = vmatpush1.bf16.msra.mxu0 %v2319
    %2449 = vmatprep.subr.bf16.mxu0 %v2322
    %2450 = vmatpush1.bf16.msra.mxu0 %v2321
    %2451 = vmatprep.subr.bf16.mxu0 %v2324
    %2452 = vmatpush1.bf16.msra.mxu0 %v2323
    %2453 = vmatprep.subr.bf16.mxu0 %v2326
    %2454 = vmatpush1.bf16.msra.mxu0 %v2325
    %2455 = vmatprep.subr.bf16.mxu0 %v2328
    %2456 = vmatpush1.bf16.msra.mxu0 %v2327
    %2457 = vmatprep.subr.bf16.mxu0 %v2330
    %2458 = vmatpush1.bf16.msra.mxu0 %v2329
    %2459 = vmatprep.subr.bf16.mxu0 %v2332
    %2460 = vmatpush1.bf16.msra.mxu0 %v2331
    %2461 = vmatprep.subr.bf16.mxu0 %v2334
    %2462 = vmatpush1.bf16.msra.mxu0 %v2333
    %2463 = vmatprep.subr.bf16.mxu0 %v2336
    %2464 = vmatpush1.bf16.msra.mxu0 %v2335
    %2465 = vmatprep.mubr.bf16.mxu0 %v2099
    %2466 = vmatmul.mubr.bf16.gmra.mrb[0].mxu0 %v2098
    %v2467 = vpop.f32.mrb[0].mxu0
    %v2468 = vadd.f32 %v2106, %v2467
    %v2469 = vpop.f32.mrb[0].mxu0
    %v2470 = vadd.f32 %v2110, %v2469
    %v2471 = vpop.f32.mrb[0].mxu0
    %v2472 = vpop.f32.mrb[0].mxu0
    %2473 = vdwg.mxu0
    %2474 = vmatprep.subr.bf16.mxu0 %v2338
    %2475 = vmatpush1.bf16.msra.mxu0 %v2337
    %2476 = vmatprep.subr.bf16.mxu0 %v2340
    %2477 = vmatpush1.bf16.msra.mxu0 %v2339
    %2478 = vmatprep.subr.bf16.mxu0 %v2342
    %2479 = vmatpush1.bf16.msra.mxu0 %v2341
    %2480 = vmatprep.subr.bf16.mxu0 %v2344
    %2481 = vmatpush1.bf16.msra.mxu0 %v2343
    %2482 = vmatprep.subr.bf16.mxu0 %v2346
    %2483 = vmatpush1.bf16.msra.mxu0 %v2345
    %2484 = vmatprep.subr.bf16.mxu0 %v2348
    %2485 = vmatpush1.bf16.msra.mxu0 %v2347
    %2486 = vmatprep.subr.bf16.mxu0 %v2350
    %2487 = vmatpush1.bf16.msra.mxu0 %v2349
    %2488 = vmatprep.subr.bf16.mxu0 %v2352
    %2489 = vmatpush1.bf16.msra.mxu0 %v2351
    %2490 = vmatprep.subr.bf16.mxu0 %v2354
    %2491 = vmatpush1.bf16.msra.mxu0 %v2353
    %2492 = vmatprep.subr.bf16.mxu0 %v2356
    %2493 = vmatpush1.bf16.msra.mxu0 %v2355
    %2494 = vmatprep.subr.bf16.mxu0 %v2358
    %2495 = vmatpush1.bf16.msra.mxu0 %v2357
    %2496 = vmatprep.subr.bf16.mxu0 %v2360
    %2497 = vmatpush1.bf16.msra.mxu0 %v2359
    %2498 = vmatprep.subr.bf16.mxu0 %v2362
    %2499 = vmatpush1.bf16.msra.mxu0 %v2361
    %2500 = vmatprep.subr.bf16.mxu0 %v2364
    %2501 = vmatpush1.bf16.msra.mxu0 %v2363
    %2502 = vmatprep.subr.bf16.mxu0 %v2366
    %2503 = vmatpush1.bf16.msra.mxu0 %v2365
    %2504 = vmatprep.subr.bf16.mxu0 %v2368
    %2505 = vmatpush1.bf16.msra.mxu0 %v2367
    %2506 = vmatprep.mubr.bf16.mxu0 %v2101
    %2507 = vmatmul.mubr.bf16.gmra.mrb[0].mxu0 %v2100
    %v2508 = vpop.f32.mrb[0].mxu0
    %v2509 = vadd.f32 %v2468, %v2508
    %v2510 = vpop.f32.mrb[0].mxu0
    %v2511 = vadd.f32 %v2470, %v2510
    %v2512 = vpop.f32.mrb[0].mxu0
    %v2513 = vpop.f32.mrb[0].mxu0
    %2514 = vdwg.mxu0
    %v2515 = vtanh.pop %v2509
    %v2516 = vtanh.pop %v2511
    %v2517 = vld [vmem:[#allocation7] sm:$0xff]
    %v2518 = vld [vmem:[#allocation7 + $0x8] sm:$0xff]
    %v2519 = vld [vmem:[#allocation7 + $0x10] sm:$0xff]
    %v2520 = vld [vmem:[#allocation7 + $0x18] sm:$0xff]
    %v2521 = vld [vmem:[#allocation7 + $0x20] sm:$0xff]
    %v2522 = vld [vmem:[#allocation7 + $0x28] sm:$0xff]
    %v2523 = vld [vmem:[#allocation7 + $0x30] sm:$0xff]
    %v2524 = vld [vmem:[#allocation7 + $0x38] sm:$0xff]
    %v2525 = vld [vmem:[#allocation7 + $0x40] sm:$0xff]
    %v2526 = vld [vmem:[#allocation7 + $0x48] sm:$0xff]
    %v2527 = vld [vmem:[#allocation7 + $0x50] sm:$0xff]
    %v2528 = vld [vmem:[#allocation7 + $0x58] sm:$0xff]
    %v2529 = vld [vmem:[#allocation7 + $0x60] sm:$0xff]
    %v2530 = vld [vmem:[#allocation7 + $0x68] sm:$0xff]
    %v2531 = vld [vmem:[#allocation7 + $0x70] sm:$0xff]
    %v2532 = vld [vmem:[#allocation7 + $0x78] sm:$0xff]
    %v2533 = vld [vmem:[#allocation7 + $0x80] sm:$0xff]
    %v2534 = vld [vmem:[#allocation7 + $0x88] sm:$0xff]
    %v2535 = vld [vmem:[#allocation7 + $0x90] sm:$0xff]
    %v2536 = vld [vmem:[#allocation7 + $0x98] sm:$0xff]
    %v2537 = vld [vmem:[#allocation7 + $0xa0] sm:$0xff]
    %v2538 = vld [vmem:[#allocation7 + $0xa8] sm:$0xff]
    %v2539 = vld [vmem:[#allocation7 + $0xb0] sm:$0xff]
    %v2540 = vld [vmem:[#allocation7 + $0xb8] sm:$0xff]
    %v2541 = vld [vmem:[#allocation7 + $0xc0] sm:$0xff]
    %v2542 = vld [vmem:[#allocation7 + $0xc8] sm:$0xff]
    %v2543 = vld [vmem:[#allocation7 + $0xd0] sm:$0xff]
    %v2544 = vld [vmem:[#allocation7 + $0xd8] sm:$0xff]
    %v2545 = vld [vmem:[#allocation7 + $0xe0] sm:$0xff]
    %v2546 = vld [vmem:[#allocation7 + $0xe8] sm:$0xff]
    %v2547 = vld [vmem:[#allocation7 + $0xf0] sm:$0xff]
    %v2548 = vld [vmem:[#allocation7 + $0xf8] sm:$0xff]
    %v2549 = vld [vmem:[%s8] sm:$0x3]
    %v2550 = vpack.c.bf16 %v2515, %v2515
    %v2551 = vpack.c.bf16 %v2516, %v2516
    %v2553 = vlaneseq
    %v2554 = vshrl.u32 %v2553, 7
    %v2555 = vsub.s32 0, %v2554
    %v2556 = vrot.slane %v2549, %v2555
    %v2557 = vlaneseq
    %v2558 = vshrl.u32 %v2557, 7
    %v2559 = vsub.s32 1, %v2558
    %v2560 = vrot.slane %v2549, %v2559
    %v2595 = vunpack.c.l.b16 %v2517
    %v2596 = vunpack.c.h.b16 %v2517
    %v2597 = vunpack.c.l.b16 %v2518
    %v2598 = vunpack.c.h.b16 %v2518
    %v2599 = vunpack.c.l.b16 %v2519
    %v2600 = vunpack.c.h.b16 %v2519
    %v2601 = vunpack.c.l.b16 %v2520
    %v2602 = vunpack.c.h.b16 %v2520
    %v2603 = vunpack.c.l.b16 %v2521
    %v2604 = vunpack.c.h.b16 %v2521
    %v2605 = vunpack.c.l.b16 %v2522
    %v2606 = vunpack.c.h.b16 %v2522
    %v2607 = vunpack.c.l.b16 %v2523
    %v2608 = vunpack.c.h.b16 %v2523
    %v2609 = vunpack.c.l.b16 %v2524
    %v2610 = vunpack.c.h.b16 %v2524
    %v2611 = vunpack.c.l.b16 %v2525
    %v2612 = vunpack.c.h.b16 %v2525
    %v2613 = vunpack.c.l.b16 %v2526
    %v2614 = vunpack.c.h.b16 %v2526
    %v2615 = vunpack.c.l.b16 %v2527
    %v2616 = vunpack.c.h.b16 %v2527
    %v2617 = vunpack.c.l.b16 %v2528
    %v2618 = vunpack.c.h.b16 %v2528
    %v2619 = vunpack.c.l.b16 %v2529
    %v2620 = vunpack.c.h.b16 %v2529
    %v2621 = vunpack.c.l.b16 %v2530
    %v2622 = vunpack.c.h.b16 %v2530
    %v2623 = vunpack.c.l.b16 %v2531
    %v2624 = vunpack.c.h.b16 %v2531
    %v2625 = vunpack.c.l.b16 %v2532
    %v2626 = vunpack.c.h.b16 %v2532
    %v2627 = vunpack.c.l.b16 %v2533
    %v2628 = vunpack.c.h.b16 %v2533
    %v2629 = vunpack.c.l.b16 %v2534
    %v2630 = vunpack.c.h.b16 %v2534
    %v2631 = vunpack.c.l.b16 %v2535
    %v2632 = vunpack.c.h.b16 %v2535
    %v2633 = vunpack.c.l.b16 %v2536
    %v2634 = vunpack.c.h.b16 %v2536
    %v2635 = vunpack.c.l.b16 %v2537
    %v2636 = vunpack.c.h.b16 %v2537
    %v2637 = vunpack.c.l.b16 %v2538
    %v2638 = vunpack.c.h.b16 %v2538
    %v2639 = vunpack.c.l.b16 %v2539
    %v2640 = vunpack.c.h.b16 %v2539
    %v2641 = vunpack.c.l.b16 %v2540
    %v2642 = vunpack.c.h.b16 %v2540
    %v2643 = vunpack.c.l.b16 %v2541
    %v2644 = vunpack.c.h.b16 %v2541
    %v2645 = vunpack.c.l.b16 %v2542
    %v2646 = vunpack.c.h.b16 %v2542
    %v2647 = vunpack.c.l.b16 %v2543
    %v2648 = vunpack.c.h.b16 %v2543
    %v2649 = vunpack.c.l.b16 %v2544
    %v2650 = vunpack.c.h.b16 %v2544
    %v2651 = vunpack.c.l.b16 %v2545
    %v2652 = vunpack.c.h.b16 %v2545
    %v2653 = vunpack.c.l.b16 %v2546
    %v2654 = vunpack.c.h.b16 %v2546
    %v2655 = vunpack.c.l.b16 %v2547
    %v2656 = vunpack.c.h.b16 %v2547
    %v2657 = vunpack.c.l.b16 %v2548
    %v2658 = vunpack.c.h.b16 %v2548
    %v2659 = vpack.c.b16 %v2597, %v2595
    %v2660 = vpack.c.b16 %v2598, %v2596
    %v2661 = vpack.c.b16 %v2601, %v2599
    %v2662 = vpack.c.b16 %v2602, %v2600
    %v2663 = vpack.c.b16 %v2605, %v2603
    %v2664 = vpack.c.b16 %v2606, %v2604
    %v2665 = vpack.c.b16 %v2609, %v2607
    %v2666 = vpack.c.b16 %v2610, %v2608
    %v2667 = vpack.c.b16 %v2613, %v2611
    %v2668 = vpack.c.b16 %v2614, %v2612
    %v2669 = vpack.c.b16 %v2617, %v2615
    %v2670 = vpack.c.b16 %v2618, %v2616
    %v2671 = vpack.c.b16 %v2621, %v2619
    %v2672 = vpack.c.b16 %v2622, %v2620
    %v2673 = vpack.c.b16 %v2625, %v2623
    %v2674 = vpack.c.b16 %v2626, %v2624
    %v2675 = vpack.c.b16 %v2629, %v2627
    %v2676 = vpack.c.b16 %v2630, %v2628
    %v2677 = vpack.c.b16 %v2633, %v2631
    %v2678 = vpack.c.b16 %v2634, %v2632
    %v2679 = vpack.c.b16 %v2637, %v2635
    %v2680 = vpack.c.b16 %v2638, %v2636
    %v2681 = vpack.c.b16 %v2641, %v2639
    %v2682 = vpack.c.b16 %v2642, %v2640
    %v2683 = vpack.c.b16 %v2645, %v2643
    %v2684 = vpack.c.b16 %v2646, %v2644
    %v2685 = vpack.c.b16 %v2649, %v2647
    %v2686 = vpack.c.b16 %v2650, %v2648
    %v2687 = vpack.c.b16 %v2653, %v2651
    %v2688 = vpack.c.b16 %v2654, %v2652
    %v2689 = vpack.c.b16 %v2657, %v2655
    %v2690 = vpack.c.b16 %v2658, %v2656
    %2723 = vmatprep.subr.bf16.mxu0 %v2660
    %2724 = vmatpush1.bf16.msra.mxu0 %v2659
    %2725 = vmatprep.subr.bf16.mxu0 %v2662
    %2726 = vmatpush1.bf16.msra.mxu0 %v2661
    %2727 = vmatprep.subr.bf16.mxu0 %v2664
    %2728 = vmatpush1.bf16.msra.mxu0 %v2663
    %2729 = vmatprep.subr.bf16.mxu0 %v2666
    %2730 = vmatpush1.bf16.msra.mxu0 %v2665
    %2731 = vmatprep.subr.bf16.mxu0 %v2668
    %2732 = vmatpush1.bf16.msra.mxu0 %v2667
    %2733 = vmatprep.subr.bf16.mxu0 %v2670
    %2734 = vmatpush1.bf16.msra.mxu0 %v2669
    %2735 = vmatprep.subr.bf16.mxu0 %v2672
    %2736 = vmatpush1.bf16.msra.mxu0 %v2671
    %2737 = vmatprep.subr.bf16.mxu0 %v2674
    %2738 = vmatpush1.bf16.msra.mxu0 %v2673
    %2739 = vmatprep.subr.bf16.mxu0 %v2676
    %2740 = vmatpush1.bf16.msra.mxu0 %v2675
    %2741 = vmatprep.subr.bf16.mxu0 %v2678
    %2742 = vmatpush1.bf16.msra.mxu0 %v2677
    %2743 = vmatprep.subr.bf16.mxu0 %v2680
    %2744 = vmatpush1.bf16.msra.mxu0 %v2679
    %2745 = vmatprep.subr.bf16.mxu0 %v2682
    %2746 = vmatpush1.bf16.msra.mxu0 %v2681
    %2747 = vmatprep.subr.bf16.mxu0 %v2684
    %2748 = vmatpush1.bf16.msra.mxu0 %v2683
    %2749 = vmatprep.subr.bf16.mxu0 %v2686
    %2750 = vmatpush1.bf16.msra.mxu0 %v2685
    %2751 = vmatprep.subr.bf16.mxu0 %v2688
    %2752 = vmatpush1.bf16.msra.mxu0 %v2687
    %2753 = vmatprep.subr.bf16.mxu0 %v2690
    %2754 = vmatpush1.bf16.msra.mxu0 %v2689
    %2755 = vmatprep.mubr.bf16.mxu0 %v2551
    %2756 = vmatmul.mubr.bf16.gmra.mrb[0].mxu0 %v2550
    %v2757 = vpop.f32.mrb[0].mxu0
    %v2758 = vadd.f32 %v2556, %v2757
    %v2759 = vpop.f32.mrb[0].mxu0
    %v2760 = vadd.f32 %v2560, %v2759
    %v2761 = vpop.f32.mrb[0].mxu0
    %v2762 = vpop.f32.mrb[0].mxu0
    %2763 = vdwg.mxu0
    %v2764 = vtanh.pop %v2758
    %v2765 = vtanh.pop %v2760
    %v2766 = vld [vmem:[#allocation9] sm:$0xf]
    %v2767 = vld [vmem:[#allocation9 + $0x4] sm:$0xf]
    %v2768 = vld [vmem:[#allocation9 + $0x8] sm:$0xf]
    %v2769 = vld [vmem:[#allocation9 + $0xc] sm:$0xf]
    %v2770 = vld [vmem:[#allocation9 + $0x10] sm:$0xf]
    %v2771 = vld [vmem:[#allocation9 + $0x14] sm:$0xf]
    %v2772 = vld [vmem:[#allocation9 + $0x18] sm:$0xf]
    %v2773 = vld [vmem:[#allocation9 + $0x1c] sm:$0xf]
    %v2774 = vld [vmem:[#allocation9 + $0x20] sm:$0xf]
    %v2775 = vld [vmem:[#allocation9 + $0x24] sm:$0xf]
    %v2776 = vld [vmem:[#allocation9 + $0x28] sm:$0xf]
    %v2777 = vld [vmem:[#allocation9 + $0x2c] sm:$0xf]
    %v2778 = vld [vmem:[#allocation9 + $0x30] sm:$0xf]
    %v2779 = vld [vmem:[#allocation9 + $0x34] sm:$0xf]
    %v2780 = vld [vmem:[#allocation9 + $0x38] sm:$0xf]
    %v2781 = vld [vmem:[#allocation9 + $0x3c] sm:$0xf]
    %v2782 = vld [vmem:[#allocation9 + $0x40] sm:$0xf]
    %v2783 = vld [vmem:[#allocation9 + $0x44] sm:$0xf]
    %v2784 = vld [vmem:[#allocation9 + $0x48] sm:$0xf]
    %v2785 = vld [vmem:[#allocation9 + $0x4c] sm:$0xf]
    %v2786 = vld [vmem:[#allocation9 + $0x50] sm:$0xf]
    %v2787 = vld [vmem:[#allocation9 + $0x54] sm:$0xf]
    %v2788 = vld [vmem:[#allocation9 + $0x58] sm:$0xf]
    %v2789 = vld [vmem:[#allocation9 + $0x5c] sm:$0xf]
    %v2790 = vld [vmem:[#allocation9 + $0x60] sm:$0xf]
    %v2791 = vld [vmem:[#allocation9 + $0x64] sm:$0xf]
    %v2792 = vld [vmem:[#allocation9 + $0x68] sm:$0xf]
    %v2793 = vld [vmem:[#allocation9 + $0x6c] sm:$0xf]
    %v2794 = vld [vmem:[#allocation9 + $0x70] sm:$0xf]
    %v2795 = vld [vmem:[#allocation9 + $0x74] sm:$0xf]
    %v2796 = vld [vmem:[#allocation9 + $0x78] sm:$0xf]
    %v2797 = vld [vmem:[#allocation9 + $0x7c] sm:$0xf]
    %v2798 = vld [vmem:[%s10] sm:$0x1]
    %v2799 = vpack.c.bf16 %v2764, %v2764
    %v2800 = vpack.c.bf16 %v2765, %v2765
    %v2802 = vlaneseq
    %v2803 = vshrl.u32 %v2802, 7
    %v2804 = vsub.s32 0, %v2803
    %v2805 = vrot.slane %v2798, %v2804
    %v2839 = vunpack.c.l.b16 %v2766
    %v2840 = vunpack.c.l.b16 %v2767
    %v2841 = vunpack.c.l.b16 %v2768
    %v2842 = vunpack.c.l.b16 %v2769
    %v2843 = vunpack.c.l.b16 %v2770
    %v2844 = vunpack.c.l.b16 %v2771
    %v2845 = vunpack.c.l.b16 %v2772
    %v2846 = vunpack.c.l.b16 %v2773
    %v2847 = vunpack.c.l.b16 %v2774
    %v2848 = vunpack.c.l.b16 %v2775
    %v2849 = vunpack.c.l.b16 %v2776
    %v2850 = vunpack.c.l.b16 %v2777
    %v2851 = vunpack.c.l.b16 %v2778
    %v2852 = vunpack.c.l.b16 %v2779
    %v2853 = vunpack.c.l.b16 %v2780
    %v2854 = vunpack.c.l.b16 %v2781
    %v2855 = vunpack.c.l.b16 %v2782
    %v2856 = vunpack.c.l.b16 %v2783
    %v2857 = vunpack.c.l.b16 %v2784
    %v2858 = vunpack.c.l.b16 %v2785
    %v2859 = vunpack.c.l.b16 %v2786
    %v2860 = vunpack.c.l.b16 %v2787
    %v2861 = vunpack.c.l.b16 %v2788
    %v2862 = vunpack.c.l.b16 %v2789
    %v2863 = vunpack.c.l.b16 %v2790
    %v2864 = vunpack.c.l.b16 %v2791
    %v2865 = vunpack.c.l.b16 %v2792
    %v2866 = vunpack.c.l.b16 %v2793
    %v2867 = vunpack.c.l.b16 %v2794
    %v2868 = vunpack.c.l.b16 %v2795
    %v2869 = vunpack.c.l.b16 %v2796
    %v2870 = vunpack.c.l.b16 %v2797
    %v2871 = vpack.c.b16 %v2840, %v2839
    %v2872 = vpack.c.b16 %v2842, %v2841
    %v2873 = vpack.c.b16 %v2844, %v2843
    %v2874 = vpack.c.b16 %v2846, %v2845
    %v2875 = vpack.c.b16 %v2848, %v2847
    %v2876 = vpack.c.b16 %v2850, %v2849
    %v2877 = vpack.c.b16 %v2852, %v2851
    %v2878 = vpack.c.b16 %v2854, %v2853
    %v2879 = vpack.c.b16 %v2856, %v2855
    %v2880 = vpack.c.b16 %v2858, %v2857
    %v2881 = vpack.c.b16 %v2860, %v2859
    %v2882 = vpack.c.b16 %v2862, %v2861
    %v2883 = vpack.c.b16 %v2864, %v2863
    %v2884 = vpack.c.b16 %v2866, %v2865
    %v2885 = vpack.c.b16 %v2868, %v2867
    %v2886 = vpack.c.b16 %v2870, %v2869
    %2903 = vmatprep.subr.bf16.mxu0 0
    %2904 = vmatpush1.bf16.msra.mxu0 %v2871
    %2905 = vmatprep.subr.bf16.mxu0 0
    %2906 = vmatpush1.bf16.msra.mxu0 %v2872
    %2907 = vmatprep.subr.bf16.mxu0 0
    %2908 = vmatpush1.bf16.msra.mxu0 %v2873
    %2909 = vmatprep.subr.bf16.mxu0 0
    %2910 = vmatpush1.bf16.msra.mxu0 %v2874
    %2911 = vmatprep.subr.bf16.mxu0 0
    %2912 = vmatpush1.bf16.msra.mxu0 %v2875
    %2913 = vmatprep.subr.bf16.mxu0 0
    %2914 = vmatpush1.bf16.msra.mxu0 %v2876
    %2915 = vmatprep.subr.bf16.mxu0 0
    %2916 = vmatpush1.bf16.msra.mxu0 %v2877
    %2917 = vmatprep.subr.bf16.mxu0 0
    %2918 = vmatpush1.bf16.msra.mxu0 %v2878
    %2919 = vmatprep.subr.bf16.mxu0 0
    %2920 = vmatpush1.bf16.msra.mxu0 %v2879
    %2921 = vmatprep.subr.bf16.mxu0 0
    %2922 = vmatpush1.bf16.msra.mxu0 %v2880
    %2923 = vmatprep.subr.bf16.mxu0 0
    %2924 = vmatpush1.bf16.msra.mxu0 %v2881
    %2925 = vmatprep.subr.bf16.mxu0 0
    %2926 = vmatpush1.bf16.msra.mxu0 %v2882
    %2927 = vmatprep.subr.bf16.mxu0 0
    %2928 = vmatpush1.bf16.msra.mxu0 %v2883
    %2929 = vmatprep.subr.bf16.mxu0 0
    %2930 = vmatpush1.bf16.msra.mxu0 %v2884
    %2931 = vmatprep.subr.bf16.mxu0 0
    %2932 = vmatpush1.bf16.msra.mxu0 %v2885
    %2933 = vmatprep.subr.bf16.mxu0 0
    %2934 = vmatpush1.bf16.msra.mxu0 %v2886
    %2935 = vmatprep.mubr.bf16.mxu0 %v2800
    %2936 = vmatmul.mubr.bf16.gmra.mrb[0].mxu0 %v2799
    %v2937 = vpop.f32.mrb[0].mxu0
    %v2938 = vadd.f32 %v2805, %v2937
    %v2939 = vpop.f32.mrb[0].mxu0
    %v2940 = vpop.f32.mrb[0].mxu0
    %v2941 = vpop.f32.mrb[0].mxu0
    %2942 = vdwg.mxu0
    %v2943 = vtanh.pop %v2938
    %v2944 = vld [vmem:[%s11] sm:$0xf]
    %v2945 = vld [vmem:[%s11 + $0x4] sm:$0xf]
    %v2946 = vld [vmem:[%s11 + $0x8] sm:$0xf]
    %v2947 = vld [vmem:[%s11 + $0xc] sm:$0xf]
    %v2948 = vld [vmem:[%s11 + $0x10] sm:$0xf]
    %v2949 = vld [vmem:[%s11 + $0x14] sm:$0xf]
    %v2950 = vld [vmem:[%s11 + $0x18] sm:$0xf]
    %v2951 = vld [vmem:[%s11 + $0x1c] sm:$0xf]
    %v2952 = vld [vmem:[%s11 + $0x20] sm:$0xf]
    %v2953 = vld [vmem:[%s11 + $0x24] sm:$0xf]
    %v2954 = vld [vmem:[%s11 + $0x28] sm:$0xf]
    %v2955 = vld [vmem:[%s11 + $0x2c] sm:$0xf]
    %v2956 = vld [vmem:[%s11 + $0x30] sm:$0xf]
    %v2957 = vld [vmem:[%s11 + $0x34] sm:$0xf]
    %v2958 = vld [vmem:[%s11 + $0x38] sm:$0xf]
    %v2959 = vld [vmem:[%s11 + $0x3c] sm:$0xf]
    %v2960 = vld [vmem:[%s12] sm:$0x1]
    %v2961 = vpack.c.bf16 %v2943, %v2943
    %v2963 = vlaneseq
    %v2964 = vshrl.u32 %v2963, 7
    %v2965 = vsub.s32 0, %v2964
    %v2966 = vrot.slane %v2960, %v2965
    %v2984 = vunpack.c.l.b16 %v2944
    %v2985 = vunpack.c.l.b16 %v2945
    %v2986 = vunpack.c.l.b16 %v2946
    %v2987 = vunpack.c.l.b16 %v2947
    %v2988 = vunpack.c.l.b16 %v2948
    %v2989 = vunpack.c.l.b16 %v2949
    %v2990 = vunpack.c.l.b16 %v2950
    %v2991 = vunpack.c.l.b16 %v2951
    %v2992 = vunpack.c.l.b16 %v2952
    %v2993 = vunpack.c.l.b16 %v2953
    %v2994 = vunpack.c.l.b16 %v2954
    %v2995 = vunpack.c.l.b16 %v2955
    %v2996 = vunpack.c.l.b16 %v2956
    %v2997 = vunpack.c.l.b16 %v2957
    %v2998 = vunpack.c.l.b16 %v2958
    %v2999 = vunpack.c.l.b16 %v2959
    %v3000 = vpack.c.b16 %v2985, %v2984
    %v3001 = vpack.c.b16 %v2987, %v2986
    %v3002 = vpack.c.b16 %v2989, %v2988
    %v3003 = vpack.c.b16 %v2991, %v2990
    %v3004 = vpack.c.b16 %v2993, %v2992
    %v3005 = vpack.c.b16 %v2995, %v2994
    %v3006 = vpack.c.b16 %v2997, %v2996
    %v3007 = vpack.c.b16 %v2999, %v2998
    %3016 = vmatprep.subr.bf16.mxu0 0
    %3017 = vmatpush1.bf16.msra.mxu0 %v3000
    %3018 = vmatprep.subr.bf16.mxu0 0
    %3019 = vmatpush1.bf16.msra.mxu0 %v3001
    %3020 = vmatprep.subr.bf16.mxu0 0
    %3021 = vmatpush1.bf16.msra.mxu0 %v3002
    %3022 = vmatprep.subr.bf16.mxu0 0
    %3023 = vmatpush1.bf16.msra.mxu0 %v3003
    %3024 = vmatprep.subr.bf16.mxu0 0
    %3025 = vmatpush1.bf16.msra.mxu0 %v3004
    %3026 = vmatprep.subr.bf16.mxu0 0
    %3027 = vmatpush1.bf16.msra.mxu0 %v3005
    %3028 = vmatprep.subr.bf16.mxu0 0
    %3029 = vmatpush1.bf16.msra.mxu0 %v3006
    %3030 = vmatprep.subr.bf16.mxu0 0
    %3031 = vmatpush1.bf16.msra.mxu0 %v3007
    %3032 = vmatprep.subr.bf16.mxu0 0
    %3033 = vmatpush1.bf16.msra.mxu0 0
    %3034 = vmatprep.subr.bf16.mxu0 0
    %3035 = vmatpush1.bf16.msra.mxu0 0
    %3036 = vmatprep.subr.bf16.mxu0 0
    %3037 = vmatpush1.bf16.msra.mxu0 0
    %3038 = vmatprep.subr.bf16.mxu0 0
    %3039 = vmatpush1.bf16.msra.mxu0 0
    %3040 = vmatprep.subr.bf16.mxu0 0
    %3041 = vmatpush1.bf16.msra.mxu0 0
    %3042 = vmatprep.subr.bf16.mxu0 0
    %3043 = vmatpush1.bf16.msra.mxu0 0
    %3044 = vmatprep.subr.bf16.mxu0 0
    %3045 = vmatpush1.bf16.msra.mxu0 0
    %3046 = vmatprep.subr.bf16.mxu0 0
    %3047 = vmatpush1.bf16.msra.mxu0 0
    %3048 = vmatprep.mubr.bf16.mxu0 0
    %3049 = vmatmul.mubr.bf16.gmra.mrb[0].mxu0 %v2961
    %v3050 = vpop.f32.mrb[0].mxu0
    %v3051 = vadd.f32 %v2966, %v3050
    %v3052 = vpop.f32.mrb[0].mxu0
    %v3053 = vpop.f32.mrb[0].mxu0
    %v3054 = vpop.f32.mrb[0].mxu0
    %3055 = vdwg.mxu0
    %v3056 = vtanh.pop %v3051
    %v3057 = vld [vmem:[#allocation10] sm:$0xf]
    %v3058 = vld [vmem:[#allocation10 + $0x4] sm:$0xf]
    %v3059 = vld [vmem:[#allocation10 + $0x8] sm:$0xf]
    %v3060 = vld [vmem:[#allocation10 + $0xc] sm:$0xf]
    %v3061 = vld [vmem:[#allocation10 + $0x10] sm:$0xf]
    %v3062 = vld [vmem:[#allocation10 + $0x14] sm:$0xf]
    %v3063 = vld [vmem:[#allocation10 + $0x18] sm:$0xf]
    %v3064 = vld [vmem:[#allocation10 + $0x1c] sm:$0xf]
    %v3065 = vld [vmem:[#allocation10 + $0x20] sm:$0xf]
    %v3066 = vld [vmem:[#allocation10 + $0x24] sm:$0xf]
    %v3067 = vld [vmem:[#allocation10 + $0x28] sm:$0xf]
    %v3068 = vld [vmem:[#allocation10 + $0x2c] sm:$0xf]
    %v3069 = vld [vmem:[#allocation10 + $0x30] sm:$0xf]
    %v3070 = vld [vmem:[#allocation10 + $0x34] sm:$0xf]
    %v3071 = vld [vmem:[#allocation10 + $0x38] sm:$0xf]
    %v3072 = vld [vmem:[#allocation10 + $0x3c] sm:$0xf]
    %v3073 = vld [vmem:[%s14] sm:$0x1]
    %v3074 = vpack.c.bf16 %v3056, %v3056
    %v3076 = vlaneseq
    %v3077 = vshrl.u32 %v3076, 7
    %v3078 = vsub.s32 0, %v3077
    %v3079 = vrot.slane %v3073, %v3078
    %v3097 = vunpack.c.l.b16 %v3057
    %v3098 = vunpack.c.l.b16 %v3058
    %v3099 = vunpack.c.l.b16 %v3059
    %v3100 = vunpack.c.l.b16 %v3060
    %v3101 = vunpack.c.l.b16 %v3061
    %v3102 = vunpack.c.l.b16 %v3062
    %v3103 = vunpack.c.l.b16 %v3063
    %v3104 = vunpack.c.l.b16 %v3064
    %v3105 = vunpack.c.l.b16 %v3065
    %v3106 = vunpack.c.l.b16 %v3066
    %v3107 = vunpack.c.l.b16 %v3067
    %v3108 = vunpack.c.l.b16 %v3068
    %v3109 = vunpack.c.l.b16 %v3069
    %v3110 = vunpack.c.l.b16 %v3070
    %v3111 = vunpack.c.l.b16 %v3071
    %v3112 = vunpack.c.l.b16 %v3072
    %v3113 = vpack.c.b16 %v3098, %v3097
    %v3114 = vpack.c.b16 %v3100, %v3099
    %v3115 = vpack.c.b16 %v3102, %v3101
    %v3116 = vpack.c.b16 %v3104, %v3103
    %v3117 = vpack.c.b16 %v3106, %v3105
    %v3118 = vpack.c.b16 %v3108, %v3107
    %v3119 = vpack.c.b16 %v3110, %v3109
    %v3120 = vpack.c.b16 %v3112, %v3111
    %3129 = vmatprep.subr.bf16.mxu0 0
    %3130 = vmatpush1.bf16.msra.mxu0 %v3113
    %3131 = vmatprep.subr.bf16.mxu0 0
    %3132 = vmatpush1.bf16.msra.mxu0 %v3114
    %3133 = vmatprep.subr.bf16.mxu0 0
    %3134 = vmatpush1.bf16.msra.mxu0 %v3115
    %3135 = vmatprep.subr.bf16.mxu0 0
    %3136 = vmatpush1.bf16.msra.mxu0 %v3116
    %3137 = vmatprep.subr.bf16.mxu0 0
    %3138 = vmatpush1.bf16.msra.mxu0 %v3117
    %3139 = vmatprep.subr.bf16.mxu0 0
    %3140 = vmatpush1.bf16.msra.mxu0 %v3118
    %3141 = vmatprep.subr.bf16.mxu0 0
    %3142 = vmatpush1.bf16.msra.mxu0 %v3119
    %3143 = vmatprep.subr.bf16.mxu0 0
    %3144 = vmatpush1.bf16.msra.mxu0 %v3120
    %3145 = vmatprep.subr.bf16.mxu0 0
    %3146 = vmatpush1.bf16.msra.mxu0 0
    %3147 = vmatprep.subr.bf16.mxu0 0
    %3148 = vmatpush1.bf16.msra.mxu0 0
    %3149 = vmatprep.subr.bf16.mxu0 0
    %3150 = vmatpush1.bf16.msra.mxu0 0
    %3151 = vmatprep.subr.bf16.mxu0 0
    %3152 = vmatpush1.bf16.msra.mxu0 0
    %3153 = vmatprep.subr.bf16.mxu0 0
    %3154 = vmatpush1.bf16.msra.mxu0 0
    %3155 = vmatprep.subr.bf16.mxu0 0
    %3156 = vmatpush1.bf16.msra.mxu0 0
    %3157 = vmatprep.subr.bf16.mxu0 0
    %3158 = vmatpush1.bf16.msra.mxu0 0
    %3159 = vmatprep.subr.bf16.mxu0 0
    %3160 = vmatpush1.bf16.msra.mxu0 0
    %3161 = vmatprep.mubr.bf16.mxu0 0
    %3162 = vmatmul.mubr.bf16.gmra.mrb[0].mxu0 %v3074
    %v3163 = vpop.f32.mrb[0].mxu0
    %v3164 = vadd.f32 %v3079, %v3163
    %v3165 = vpop.f32.mrb[0].mxu0
    %v3166 = vpop.f32.mrb[0].mxu0
    %v3167 = vpop.f32.mrb[0].mxu0
    %3168 = vdwg.mxu0
    %v3169 = vtanh.pop %v3164
    %v3170 = vld [vmem:[#allocation12] sm:$0xf]
    %v3171 = vld [vmem:[#allocation12 + $0x4] sm:$0xf]
    %v3172 = vld [vmem:[#allocation12 + $0x8] sm:$0xf]
    %v3173 = vld [vmem:[#allocation12 + $0xc] sm:$0xf]
    %v3174 = vld [vmem:[#allocation12 + $0x10] sm:$0xf]
    %v3175 = vld [vmem:[#allocation12 + $0x14] sm:$0xf]
    %v3176 = vld [vmem:[#allocation12 + $0x18] sm:$0xf]
    %v3177 = vld [vmem:[#allocation12 + $0x1c] sm:$0xf]
    %v3178 = vld [vmem:[#allocation12 + $0x20] sm:$0xf]
    %v3179 = vld [vmem:[#allocation12 + $0x24] sm:$0xf]
    %v3180 = vld [vmem:[#allocation12 + $0x28] sm:$0xf]
    %v3181 = vld [vmem:[#allocation12 + $0x2c] sm:$0xf]
    %v3182 = vld [vmem:[#allocation12 + $0x30] sm:$0xf]
    %v3183 = vld [vmem:[#allocation12 + $0x34] sm:$0xf]
    %v3184 = vld [vmem:[#allocation12 + $0x38] sm:$0xf]
    %v3185 = vld [vmem:[#allocation12 + $0x3c] sm:$0xf]
    %v3186 = vld [vmem:[%s16] sm:$0x1]
    %v3187 = vpack.c.bf16 %v3169, %v3169
    %v3189 = vlaneseq
    %v3190 = vshrl.u32 %v3189, 7
    %v3191 = vsub.s32 0, %v3190
    %v3192 = vrot.slane %v3186, %v3191
    %v3210 = vunpack.c.l.b16 %v3170
    %v3211 = vunpack.c.l.b16 %v3171
    %v3212 = vunpack.c.l.b16 %v3172
    %v3213 = vunpack.c.l.b16 %v3173
    %v3214 = vunpack.c.l.b16 %v3174
    %v3215 = vunpack.c.l.b16 %v3175
    %v3216 = vunpack.c.l.b16 %v3176
    %v3217 = vunpack.c.l.b16 %v3177
    %v3218 = vunpack.c.l.b16 %v3178
    %v3219 = vunpack.c.l.b16 %v3179
    %v3220 = vunpack.c.l.b16 %v3180
    %v3221 = vunpack.c.l.b16 %v3181
    %v3222 = vunpack.c.l.b16 %v3182
    %v3223 = vunpack.c.l.b16 %v3183
    %v3224 = vunpack.c.l.b16 %v3184
    %v3225 = vunpack.c.l.b16 %v3185
    %v3226 = vpack.c.b16 %v3211, %v3210
    %v3227 = vpack.c.b16 %v3213, %v3212
    %v3228 = vpack.c.b16 %v3215, %v3214
    %v3229 = vpack.c.b16 %v3217, %v3216
    %v3230 = vpack.c.b16 %v3219, %v3218
    %v3231 = vpack.c.b16 %v3221, %v3220
    %v3232 = vpack.c.b16 %v3223, %v3222
    %v3233 = vpack.c.b16 %v3225, %v3224
    %3242 = vmatprep.subr.bf16.mxu0 0
    %3243 = vmatpush1.bf16.msra.mxu0 %v3226
    %3244 = vmatprep.subr.bf16.mxu0 0
    %3245 = vmatpush1.bf16.msra.mxu0 %v3227
    %3246 = vmatprep.subr.bf16.mxu0 0
    %3247 = vmatpush1.bf16.msra.mxu0 %v3228
    %3248 = vmatprep.subr.bf16.mxu0 0
    %3249 = vmatpush1.bf16.msra.mxu0 %v3229
    %3250 = vmatprep.subr.bf16.mxu0 0
    %3251 = vmatpush1.bf16.msra.mxu0 %v3230
    %3252 = vmatprep.subr.bf16.mxu0 0
    %3253 = vmatpush1.bf16.msra.mxu0 %v3231
    %3254 = vmatprep.subr.bf16.mxu0 0
    %3255 = vmatpush1.bf16.msra.mxu0 %v3232
    %3256 = vmatprep.subr.bf16.mxu0 0
    %3257 = vmatpush1.bf16.msra.mxu0 %v3233
    %3258 = vmatprep.subr.bf16.mxu0 0
    %3259 = vmatpush1.bf16.msra.mxu0 0
    %3260 = vmatprep.subr.bf16.mxu0 0
    %3261 = vmatpush1.bf16.msra.mxu0 0
    %3262 = vmatprep.subr.bf16.mxu0 0
    %3263 = vmatpush1.bf16.msra.mxu0 0
    %3264 = vmatprep.subr.bf16.mxu0 0
    %3265 = vmatpush1.bf16.msra.mxu0 0
    %3266 = vmatprep.subr.bf16.mxu0 0
    %3267 = vmatpush1.bf16.msra.mxu0 0
    %3268 = vmatprep.subr.bf16.mxu0 0
    %3269 = vmatpush1.bf16.msra.mxu0 0
    %3270 = vmatprep.subr.bf16.mxu0 0
    %3271 = vmatpush1.bf16.msra.mxu0 0
    %3272 = vmatprep.subr.bf16.mxu0 0
    %3273 = vmatpush1.bf16.msra.mxu0 0
    %3274 = vmatprep.mubr.bf16.mxu0 0
    %3275 = vmatmul.mubr.bf16.gmra.mrb[0].mxu0 %v3187
    %v3276 = vpop.f32.mrb[0].mxu0
    %v3277 = vadd.f32 %v3192, %v3276
    %v3278 = vpop.f32.mrb[0].mxu0
    %v3279 = vpop.f32.mrb[0].mxu0
    %v3280 = vpop.f32.mrb[0].mxu0
    %3281 = vdwg.mxu0
    %3282 = vst [vmem:[%s17] sm:$0xff] %v3277
    // Predicated region
    $region98: #{large_pinn_net.1} parent=1 // pred_check
      _
    $region99: #{large_pinn_net.1} parent=1 // pred_check_branch
      %3284 = sbr.rel (0) target = $region101
    $region100: #{large_pinn_net.1} parent=1 // pred_region
      _
    $region101: #{large_pinn_net.1} parent=1 // pred_fallthru
      _
    // Predicated region
    $region102: #{large_pinn_net.1} parent=1 // pred_check
      _
    $region103: #{large_pinn_net.1} parent=1 // pred_check_branch
      %3286 = sbr.rel (0) target = $region105
    $region104: #{large_pinn_net.1} parent=1 // pred_region
      _
    $region105: #{large_pinn_net.1} parent=1 // pred_fallthru
      _
    %3287 = vsyncpa [#allocation3], 1
    %3288 = vsyncpa [#allocation5], 1
    %3289 = vsyncpa [#allocation8], 1
    %3290 = vsyncpa [#allocation11], 1

</llo_original>
